<compile_context>
chip_gen: v7x
topology: tpu7x:2x2x1
jax: 0.10.0
libtpu: 0.0.40
codegen_flags: <defaults>
</compile_context>

<pallas_src>
import functools

import jax
import jax.numpy as jnp
from jax import lax
from jax.experimental import pallas as pl
from jax.experimental.pallas import tpu as pltpu


# ----------------------------------------------------------------------------
# Fused Pallas kernel: all MSG branches, MLP (+folded BN) + ReLU + max over K
# ----------------------------------------------------------------------------
def _fused_mlp_maxpool_kernel(layer_counts, c_pad, *refs):
    nb = len(layer_counts)
    grouped_refs = refs[:nb]          # one per radius branch: [K_i, tile_M, Cin] bf16
    param_refs = refs[nb:-1]          # per layer: weight(bf16), scale(f32), bias(f32)
    out_ref = refs[-1]                # [tile_M, c_pad] f32 (lane-dense slab)

    pieces = []
    p = 0
    for bi in range(nb):
        g = grouped_refs[bi][...]                      # [K, tm, Cin] bf16
        K, tm, cin = g.shape
        x = g.reshape(K * tm, cin)                     # K folded into the MXU M dim
        n_layers = layer_counts[bi]
        for j in range(n_layers):
            w = param_refs[p][...]                     # [C_prev, C_out] bf16
            scale = param_refs[p + 1][...]             # [1, C_out] f32 (BN gamma/sqrt(var+eps))
            bias = param_refs[p + 2][...]              # [1, C_out] f32 (folded conv bias + BN shift)
            p += 3
            y = jnp.dot(x, w, preferred_element_type=jnp.float32)
            y = jnp.maximum(y * scale + bias, 0.0)
            # keep last layer in f32 for the max-pool; cast only between layers
            x = y.astype(jnp.bfloat16) if j + 1 < n_layers else y
        cout = x.shape[-1]
        # max over the LEADING K axis: K contiguous [tm, cout] slabs -> pure VPU max
        pieces.append(jnp.max(x.reshape(K, tm, cout), axis=0))

    full = jnp.concatenate(pieces, axis=-1)            # [tm, sum(Cout)]
    tm = full.shape[0]
    c_total = full.shape[-1]
    if c_total < c_pad:                                # pad lanes -> dense 128-wide store
        full = jnp.concatenate(
            [full, jnp.zeros((tm, c_pad - c_total), jnp.float32)], axis=-1)
    out_ref[...] = full


def run_fused_msg_mlp(grouped_list, params_list, *, tile_m=None):
    """grouped_list[i]: [B, S, K_i, Cin] f32 -> [B, S, sum(Cout)] f32."""
    B, S = grouped_list[0].shape[:2]
    M = B * S
    couts = [w_list[-1].shape[1] for (w_list, _, _) in params_list]
    c_total = sum(couts)
    c_pad = max(128, ((c_total + 127) // 128) * 128)   # lane-dense output width

    if tile_m is None:
        # >=2 grid steps when possible (shards across v7x's 2 TensorCores),
        # row blocks a multiple of 8 sublanes, capped so double-buffered
        # activations stay tiny vs VMEM on every generation.
        tile_m = M
        for cand in (512, 256, 128, 64, 32, 16, 8):
            if cand < M and M % cand == 0:
                tile_m = cand
                break
    assert M % tile_m == 0

    args = []
    in_specs = []
    layer_counts = []
    for grouped, (weights, _, _) in zip(grouped_list, params_list):
        K = grouped.shape[2]
        cin = grouped.shape[3]
        # [B,S,K,C] -> [K, B*S, C]: K leading so the in-kernel max is over
        # contiguous slabs; bf16 halves the HBM->VMEM DMA bytes.
        g = jnp.transpose(grouped, (2, 0, 1, 3)).reshape(K, M, cin).astype(jnp.bfloat16)
        args.append(g)
        in_specs.append(pl.BlockSpec((K, tile_m, cin), lambda m: (0, m, 0)))
        layer_counts.append(len(weights))
    for weights, scales, biases in params_list:
        for w, s, b in zip(weights, scales, biases):
            args += [w, s, b]
            in_specs += [pl.BlockSpec(w.shape, lambda m: (0, 0)),
                         pl.BlockSpec(s.shape, lambda m: (0, 0)),
                         pl.BlockSpec(b.shape, lambda m: (0, 0))]

    out = pl.pallas_call(
        functools.partial(_fused_mlp_maxpool_kernel, tuple(layer_counts), c_pad),
        out_shape=jax.ShapeDtypeStruct((M, c_pad), jnp.float32),
        grid=(M // tile_m,),
        in_specs=in_specs,
        out_specs=pl.BlockSpec((tile_m, c_pad), lambda m: (m, 0)),
        compiler_params=pltpu.CompilerParams(
            dimension_semantics=("parallel",),
            # tiny at these shapes; at production shapes retune tile_m so
            # double-buffered activations fit v7x's 64 MiB VMEM.
            vmem_limit_bytes=32 * 1024 * 1024),
    )(*args)
    return out[:, :c_total].reshape(B, S, c_total)


# Pure-JAX reference for the fused hot path (identical math: bf16 matmuls,
# f32 accumulation / scale / bias / ReLU, max over K).
def ref_fused_msg_mlp(grouped_list, params_list):
    outs = []
    for grouped, (weights, scales, biases) in zip(grouped_list, params_list):
        B, S, K, cin = grouped.shape
        x = grouped.astype(jnp.bfloat16).reshape(B, S * K, cin)
        n_layers = len(weights)
        for j, (w, s, bb) in enumerate(zip(weights, scales, biases)):
            y = jnp.einsum("bnc,cd->bnd", x, w, preferred_element_type=jnp.float32)
            y = jnp.maximum(y * s + bb, 0.0)
            x = y.astype(jnp.bfloat16) if j + 1 < n_layers else y
        outs.append(jnp.max(x.reshape(B, S, K, -1), axis=2))
    return jnp.concatenate(outs, axis=-1)


# ----------------------------------------------------------------------------
# Plain-JAX glue replicating the PyTorch helpers (data-dependent gathers)
# ----------------------------------------------------------------------------
def square_distance(src, dst):
    d = -2.0 * jnp.einsum("bnc,bmc->bnm", src, dst)
    d += jnp.sum(src ** 2, -1)[:, :, None]
    d += jnp.sum(dst ** 2, -1)[:, None, :]
    return d


def farthest_point_sample(xyz, npoint, key):
    # xyz: [B, N, 3]; start point random (torch.randint analog via JAX PRNG)
    B, N, _ = xyz.shape
    farthest = jax.random.randint(key, (B,), 0, N, dtype=jnp.int32)
    distance = jnp.full((B, N), 1e10, jnp.float32)
    centroids = jnp.zeros((B, npoint), jnp.int32)

    def body(i, carry):
        cents, dist_acc, far = carry
        cents = cents.at[:, i].set(far)
        centroid = jnp.take_along_axis(xyz, far[:, None, None], axis=1)  # [B,1,3]
        dist = jnp.sum((xyz - centroid) ** 2, -1)
        dist_acc = jnp.minimum(dist_acc, dist)
        far = jnp.argmax(dist_acc, -1).astype(jnp.int32)
        return cents, dist_acc, far

    centroids, _, _ = lax.fori_loop(0, npoint, body, (centroids, distance, farthest))
    return centroids


def query_ball_point(radius, nsample, xyz, new_xyz):
    # Partial selection (top_k) of the nsample smallest in-radius indices
    # instead of a full O(N log N) sort over N.
    B, N, _ = xyz.shape
    sqrdists = square_distance(new_xyz, xyz)                       # [B,S,N]
    idx = jnp.arange(N, dtype=jnp.float32)
    masked = jnp.where(sqrdists > radius ** 2, jnp.float32(N), idx)
    neg_vals, _ = lax.top_k(-masked, nsample)                      # ascending smallest
    group_idx = (-neg_vals).astype(jnp.int32)                      # [B,S,nsample]
    first = group_idx[:, :, :1]
    first = jnp.where(first == N, 0, first)
    group_idx = jnp.where(group_idx == N, first, group_idx)
    return group_idx


def index_points(points_bnc, idx):
    # points_bnc: [B,N,C], idx: [B, ...] -> [B, ..., C]
    B = points_bnc.shape[0]
    flat = idx.reshape(B, -1)
    out = jnp.take_along_axis(points_bnc, flat[..., None], axis=1)
    return out.reshape(idx.shape + (points_bnc.shape[-1],))


# ----------------------------------------------------------------------------
# Parameter init (deterministic, synthetic) with eval-mode BatchNorm folding
# ----------------------------------------------------------------------------
# TODO(synk): BatchNorm is applied in inference mode (folded running stats);
# training-mode batch statistics would need a cross-(B,S,K) reduction.
def init_params(key, in_channel, mlp_list):
    eps = 1e-5
    params = []
    for mlps in mlp_list:
        weights, scales, biases = [], [], []
        last = in_channel
        for out in mlps:
            key, k1, k2, k3, k4, k5, k6 = jax.random.split(key, 7)
            w = jax.random.normal(k1, (last, out), jnp.float32) / jnp.sqrt(float(last))
            conv_b = jax.random.normal(k2, (out,), jnp.float32) * 0.05
            gamma = jax.random.uniform(k3, (out,), jnp.float32, 0.5, 1.5)
            beta = jax.random.normal(k4, (out,), jnp.float32) * 0.1
            mean = jax.random.normal(k5, (out,), jnp.float32) * 0.1
            var = jax.random.uniform(k6, (out,), jnp.float32, 0.5, 1.5)
            s = gamma / jnp.sqrt(var + eps)
            b = (conv_b - mean) * s + beta
            weights.append(w.astype(jnp.bfloat16))      # MXU-native weights
            scales.append(s.reshape(1, out))            # f32 scale
            biases.append(b.reshape(1, out))            # f32 bias
            last = out
        params.append((weights, scales, biases))
    return params


# ----------------------------------------------------------------------------
# Module forward (PointNetSetAbstractionMsg, knn=False branch)
# ----------------------------------------------------------------------------
def pointnet_sa_msg_forward(xyz_bcn, points_bdn, params, npoint,
                            radius_list, nsample_list, fps_key, use_pallas=True):
    xyz = jnp.transpose(xyz_bcn, (0, 2, 1))        # [B,N,3]
    feats = jnp.transpose(points_bdn, (0, 2, 1))   # [B,N,D]

    fps_idx = farthest_point_sample(xyz, npoint, fps_key)   # [B,S]
    new_xyz = index_points(xyz, fps_idx)                     # [B,S,3]

    grouped_list = []
    for i, radius in enumerate(radius_list):
        K = nsample_list[i]
        group_idx = query_ball_point(radius, K, xyz, new_xyz)            # [B,S,K]
        grouped_xyz = index_points(xyz, group_idx) - new_xyz[:, :, None, :]
        grouped_feat = index_points(feats, group_idx)                     # [B,S,K,D]
        grouped_list.append(
            jnp.concatenate([grouped_feat, grouped_xyz], axis=-1))        # [B,S,K,D+3]

    if use_pallas:
        new_points = run_fused_msg_mlp(grouped_list, params)              # [B,S,sumC]
    else:
        new_points = ref_fused_msg_mlp(grouped_list, params)

    # back to PyTorch conventions: new_xyz [B,3,S], new_points [B,D',S]
    return (jnp.transpose(new_xyz, (0, 2, 1)),
            jnp.transpose(new_points, (0, 2, 1)))


if __name__ == "__main__":
    key = jax.random.PRNGKey(0)
    k_xyz, k_pts, k_fps, k_par = jax.random.split(key, 4)

    # Small shapes: B=2 clouds, N=64 points, D=5 extra features, S=16 centroids
    B, N, D = 2, 64, 5
    npoint = 16
    radius_list = [0.4, 0.8]
    nsample_list = [8, 16]
    mlp_list = [[8, 16], [8, 16, 32]]
    in_channel = D + 3  # grouped features = [points, relative xyz]

    xyz_bcn = jax.random.uniform(k_xyz, (B, 3, N), jnp.float32, -1.0, 1.0)
    points_bdn = jax.random.normal(k_pts, (B, D, N), jnp.float32)

    params = init_params(k_par, in_channel, mlp_list)

    new_xyz, new_points = pointnet_sa_msg_forward(
        xyz_bcn, points_bdn, params, npoint, radius_list, nsample_list,
        k_fps, use_pallas=True)
    jax.block_until_ready((new_xyz, new_points))

    # Pure-JAX reference for the fused Pallas hot path.
    ref_xyz, ref_points = pointnet_sa_msg_forward(
        xyz_bcn, points_bdn, params, npoint, radius_list, nsample_list,
        k_fps, use_pallas=False)
    jax.block_until_ready((ref_xyz, ref_points))

    assert new_xyz.shape == (B, 3, npoint)
    assert new_points.shape == (B, sum(m[-1] for m in mlp_list), npoint)
    assert jnp.allclose(new_points, ref_points, rtol=1e-3, atol=1e-3)
    assert jnp.allclose(new_xyz, ref_xyz)

    print("KERNEL_OK")
</pallas_src>

<mosaic_0001>
module attributes {stable_mosaic.version = 11 : i64} {
  func.func @_fused_mlp_maxpool_kernel(%arg0: i32, %arg1: memref<8x16x8xbf16, #tpu.memory_space<vmem>>, %arg2: memref<16x16x8xbf16, #tpu.memory_space<vmem>>, %arg3: memref<8x8xbf16, #tpu.memory_space<vmem>>, %arg4: memref<1x8xf32, #tpu.memory_space<vmem>>, %arg5: memref<1x8xf32, #tpu.memory_space<vmem>>, %arg6: memref<8x16xbf16, #tpu.memory_space<vmem>>, %arg7: memref<1x16xf32, #tpu.memory_space<vmem>>, %arg8: memref<1x16xf32, #tpu.memory_space<vmem>>, %arg9: memref<8x8xbf16, #tpu.memory_space<vmem>>, %arg10: memref<1x8xf32, #tpu.memory_space<vmem>>, %arg11: memref<1x8xf32, #tpu.memory_space<vmem>>, %arg12: memref<8x16xbf16, #tpu.memory_space<vmem>>, %arg13: memref<1x16xf32, #tpu.memory_space<vmem>>, %arg14: memref<1x16xf32, #tpu.memory_space<vmem>>, %arg15: memref<16x32xbf16, #tpu.memory_space<vmem>>, %arg16: memref<1x32xf32, #tpu.memory_space<vmem>>, %arg17: memref<1x32xf32, #tpu.memory_space<vmem>>, %arg18: memref<16x128xf32, #tpu.memory_space<vmem>>) attributes {dimension_semantics = [#tpu.dimension_semantics<parallel>], iteration_bounds = array<i64: 2>, scalar_prefetch = 0 : i64, scratch_operands = 0 : i64, tpu.core_type = #tpu.core_type<tc>, window_params = [{transform_indices = @transform_0, window_bounds = array<i64: 8, 16, 8>}, {transform_indices = @transform_1, window_bounds = array<i64: 16, 16, 8>}, {pipeline_mode = #tpu.pipeline_mode<synchronous>, transform_indices = @transform_2, window_bounds = array<i64: 8, 8>}, {pipeline_mode = #tpu.pipeline_mode<synchronous>, transform_indices = @transform_3, window_bounds = array<i64: 1, 8>}, {pipeline_mode = #tpu.pipeline_mode<synchronous>, transform_indices = @transform_4, window_bounds = array<i64: 1, 8>}, {pipeline_mode = #tpu.pipeline_mode<synchronous>, transform_indices = @transform_5, window_bounds = array<i64: 8, 16>}, {pipeline_mode = #tpu.pipeline_mode<synchronous>, transform_indices = @transform_6, window_bounds = array<i64: 1, 16>}, {pipeline_mode = #tpu.pipeline_mode<synchronous>, transform_indices = @transform_7, window_bounds = array<i64: 1, 16>}, {pipeline_mode = #tpu.pipeline_mode<synchronous>, transform_indices = @transform_8, window_bounds = array<i64: 8, 8>}, {pipeline_mode = #tpu.pipeline_mode<synchronous>, transform_indices = @transform_9, window_bounds = array<i64: 1, 8>}, {pipeline_mode = #tpu.pipeline_mode<synchronous>, transform_indices = @transform_10, window_bounds = array<i64: 1, 8>}, {pipeline_mode = #tpu.pipeline_mode<synchronous>, transform_indices = @transform_11, window_bounds = array<i64: 8, 16>}, {pipeline_mode = #tpu.pipeline_mode<synchronous>, transform_indices = @transform_12, window_bounds = array<i64: 1, 16>}, {pipeline_mode = #tpu.pipeline_mode<synchronous>, transform_indices = @transform_13, window_bounds = array<i64: 1, 16>}, {pipeline_mode = #tpu.pipeline_mode<synchronous>, transform_indices = @transform_14, window_bounds = array<i64: 16, 32>}, {pipeline_mode = #tpu.pipeline_mode<synchronous>, transform_indices = @transform_15, window_bounds = array<i64: 1, 32>}, {pipeline_mode = #tpu.pipeline_mode<synchronous>, transform_indices = @transform_16, window_bounds = array<i64: 1, 32>}, {transform_indices = @transform_17, window_bounds = array<i64: 16, 128>}]} {
    %c0 = arith.constant 0 : index
    %c0_0 = arith.constant 0 : index
    %c0_1 = arith.constant 0 : index
    %0 = vector.load %arg1[%c0, %c0_0, %c0_1] : memref<8x16x8xbf16, #tpu.memory_space<vmem>>, vector<8x16x8xbf16>
    %1 = vector.shape_cast %0 : vector<8x16x8xbf16> to vector<128x8xbf16>
    %c0_2 = arith.constant 0 : index
    %c0_3 = arith.constant 0 : index
    %2 = vector.load %arg3[%c0_2, %c0_3] : memref<8x8xbf16, #tpu.memory_space<vmem>>, vector<8x8xbf16>
    %c0_4 = arith.constant 0 : index
    %c0_5 = arith.constant 0 : index
    %3 = vector.load %arg4[%c0_4, %c0_5] : memref<1x8xf32, #tpu.memory_space<vmem>>, vector<1x8xf32>
    %c0_6 = arith.constant 0 : index
    %c0_7 = arith.constant 0 : index
    %4 = vector.load %arg5[%c0_6, %c0_7] : memref<1x8xf32, #tpu.memory_space<vmem>>, vector<1x8xf32>
    %cst = arith.constant dense<0.000000e+00> : vector<128x8xf32>
    %5 = tpu.matmul %1, %2, %cst {dimension_numbers = #tpu.dot_dimension_numbers<[1], [0], [0], [1], [0, 0, 1, 1], [], []>} : vector<128x8xbf16>, vector<8x8xbf16>, vector<128x8xf32> -> vector<128x8xf32>
    %6 = vector.broadcast %3 : vector<1x8xf32> to vector<128x8xf32>
    %7 = arith.mulf %5, %6 : vector<128x8xf32>
    %8 = vector.broadcast %4 : vector<1x8xf32> to vector<128x8xf32>
    %9 = arith.addf %7, %8 : vector<128x8xf32>
    %cst_8 = arith.constant 0.000000e+00 : f32
    %10 = vector.broadcast %cst_8 : f32 to vector<128x8xf32>
    %11 = arith.maximumf %9, %10 : vector<128x8xf32>
    %12 = arith.truncf %11 : vector<128x8xf32> to vector<128x8xbf16>
    %c0_9 = arith.constant 0 : index
    %c0_10 = arith.constant 0 : index
    %13 = vector.load %arg6[%c0_9, %c0_10] : memref<8x16xbf16, #tpu.memory_space<vmem>>, vector<8x16xbf16>
    %c0_11 = arith.constant 0 : index
    %c0_12 = arith.constant 0 : index
    %14 = vector.load %arg7[%c0_11, %c0_12] : memref<1x16xf32, #tpu.memory_space<vmem>>, vector<1x16xf32>
    %c0_13 = arith.constant 0 : index
    %c0_14 = arith.constant 0 : index
    %15 = vector.load %arg8[%c0_13, %c0_14] : memref<1x16xf32, #tpu.memory_space<vmem>>, vector<1x16xf32>
    %cst_15 = arith.constant dense<0.000000e+00> : vector<128x16xf32>
    %16 = tpu.matmul %12, %13, %cst_15 {dimension_numbers = #tpu.dot_dimension_numbers<[1], [0], [0], [1], [0, 0, 1, 1], [], []>} : vector<128x8xbf16>, vector<8x16xbf16>, vector<128x16xf32> -> vector<128x16xf32>
    %17 = vector.broadcast %14 : vector<1x16xf32> to vector<128x16xf32>
    %18 = arith.mulf %16, %17 : vector<128x16xf32>
    %19 = vector.broadcast %15 : vector<1x16xf32> to vector<128x16xf32>
    %20 = arith.addf %18, %19 : vector<128x16xf32>
    %cst_16 = arith.constant 0.000000e+00 : f32
    %21 = vector.broadcast %cst_16 : f32 to vector<128x16xf32>
    %22 = arith.maximumf %20, %21 : vector<128x16xf32>
    %23 = vector.shape_cast %22 : vector<128x16xf32> to vector<8x16x16xf32>
    %cst_17 = arith.constant dense<0xFF800000> : vector<16x16xf32>
    %24 = vector.multi_reduction <maximumf>, %23, %cst_17 [0] : vector<8x16x16xf32> to vector<16x16xf32>
    %c0_18 = arith.constant 0 : index
    %c0_19 = arith.constant 0 : index
    %c0_20 = arith.constant 0 : index
    %25 = vector.load %arg2[%c0_18, %c0_19, %c0_20] : memref<16x16x8xbf16, #tpu.memory_space<vmem>>, vector<16x16x8xbf16>
    %26 = vector.shape_cast %25 : vector<16x16x8xbf16> to vector<256x8xbf16>
    %c0_21 = arith.constant 0 : index
    %c0_22 = arith.constant 0 : index
    %27 = vector.load %arg9[%c0_21, %c0_22] : memref<8x8xbf16, #tpu.memory_space<vmem>>, vector<8x8xbf16>
    %c0_23 = arith.constant 0 : index
    %c0_24 = arith.constant 0 : index
    %28 = vector.load %arg10[%c0_23, %c0_24] : memref<1x8xf32, #tpu.memory_space<vmem>>, vector<1x8xf32>
    %c0_25 = arith.constant 0 : index
    %c0_26 = arith.constant 0 : index
    %29 = vector.load %arg11[%c0_25, %c0_26] : memref<1x8xf32, #tpu.memory_space<vmem>>, vector<1x8xf32>
    %cst_27 = arith.constant dense<0.000000e+00> : vector<256x8xf32>
    %30 = tpu.matmul %26, %27, %cst_27 {dimension_numbers = #tpu.dot_dimension_numbers<[1], [0], [0], [1], [0, 0, 1, 1], [], []>} : vector<256x8xbf16>, vector<8x8xbf16>, vector<256x8xf32> -> vector<256x8xf32>
    %31 = vector.broadcast %28 : vector<1x8xf32> to vector<256x8xf32>
    %32 = arith.mulf %30, %31 : vector<256x8xf32>
    %33 = vector.broadcast %29 : vector<1x8xf32> to vector<256x8xf32>
    %34 = arith.addf %32, %33 : vector<256x8xf32>
    %cst_28 = arith.constant 0.000000e+00 : f32
    %35 = vector.broadcast %cst_28 : f32 to vector<256x8xf32>
    %36 = arith.maximumf %34, %35 : vector<256x8xf32>
    %37 = arith.truncf %36 : vector<256x8xf32> to vector<256x8xbf16>
    %c0_29 = arith.constant 0 : index
    %c0_30 = arith.constant 0 : index
    %38 = vector.load %arg12[%c0_29, %c0_30] : memref<8x16xbf16, #tpu.memory_space<vmem>>, vector<8x16xbf16>
    %c0_31 = arith.constant 0 : index
    %c0_32 = arith.constant 0 : index
    %39 = vector.load %arg13[%c0_31, %c0_32] : memref<1x16xf32, #tpu.memory_space<vmem>>, vector<1x16xf32>
    %c0_33 = arith.constant 0 : index
    %c0_34 = arith.constant 0 : index
    %40 = vector.load %arg14[%c0_33, %c0_34] : memref<1x16xf32, #tpu.memory_space<vmem>>, vector<1x16xf32>
    %cst_35 = arith.constant dense<0.000000e+00> : vector<256x16xf32>
    %41 = tpu.matmul %37, %38, %cst_35 {dimension_numbers = #tpu.dot_dimension_numbers<[1], [0], [0], [1], [0, 0, 1, 1], [], []>} : vector<256x8xbf16>, vector<8x16xbf16>, vector<256x16xf32> -> vector<256x16xf32>
    %42 = vector.broadcast %39 : vector<1x16xf32> to vector<256x16xf32>
    %43 = arith.mulf %41, %42 : vector<256x16xf32>
    %44 = vector.broadcast %40 : vector<1x16xf32> to vector<256x16xf32>
    %45 = arith.addf %43, %44 : vector<256x16xf32>
    %cst_36 = arith.constant 0.000000e+00 : f32
    %46 = vector.broadcast %cst_36 : f32 to vector<256x16xf32>
    %47 = arith.maximumf %45, %46 : vector<256x16xf32>
    %48 = arith.truncf %47 : vector<256x16xf32> to vector<256x16xbf16>
    %c0_37 = arith.constant 0 : index
    %c0_38 = arith.constant 0 : index
    %49 = vector.load %arg15[%c0_37, %c0_38] : memref<16x32xbf16, #tpu.memory_space<vmem>>, vector<16x32xbf16>
    %c0_39 = arith.constant 0 : index
    %c0_40 = arith.constant 0 : index
    %50 = vector.load %arg16[%c0_39, %c0_40] : memref<1x32xf32, #tpu.memory_space<vmem>>, vector<1x32xf32>
    %c0_41 = arith.constant 0 : index
    %c0_42 = arith.constant 0 : index
    %51 = vector.load %arg17[%c0_41, %c0_42] : memref<1x32xf32, #tpu.memory_space<vmem>>, vector<1x32xf32>
    %cst_43 = arith.constant dense<0.000000e+00> : vector<256x32xf32>
    %52 = tpu.matmul %48, %49, %cst_43 {dimension_numbers = #tpu.dot_dimension_numbers<[1], [0], [0], [1], [0, 0, 1, 1], [], []>} : vector<256x16xbf16>, vector<16x32xbf16>, vector<256x32xf32> -> vector<256x32xf32>
    %53 = vector.broadcast %50 : vector<1x32xf32> to vector<256x32xf32>
    %54 = arith.mulf %52, %53 : vector<256x32xf32>
    %55 = vector.broadcast %51 : vector<1x32xf32> to vector<256x32xf32>
    %56 = arith.addf %54, %55 : vector<256x32xf32>
    %cst_44 = arith.constant 0.000000e+00 : f32
    %57 = vector.broadcast %cst_44 : f32 to vector<256x32xf32>
    %58 = arith.maximumf %56, %57 : vector<256x32xf32>
    %59 = vector.shape_cast %58 : vector<256x32xf32> to vector<16x16x32xf32>
    %cst_45 = arith.constant dense<0xFF800000> : vector<16x32xf32>
    %60 = vector.multi_reduction <maximumf>, %59, %cst_45 [0] : vector<16x16x32xf32> to vector<16x32xf32>
    %61 = tpu.concatenate %24, %60 in 1 : vector<16x16xf32>, vector<16x32xf32> -> vector<16x48xf32>
    %cst_46 = arith.constant 0.000000e+00 : f32
    %62 = vector.broadcast %cst_46 : f32 to vector<16x80xf32>
    %63 = tpu.concatenate %61, %62 in 1 : vector<16x48xf32>, vector<16x80xf32> -> vector<16x128xf32>
    %c0_47 = arith.constant 0 : index
    %c0_48 = arith.constant 0 : index
    %64 = vector.load %arg18[%c0_47, %c0_48] : memref<16x128xf32, #tpu.memory_space<vmem>>, vector<16x128xf32>
    tpu.vector_store %arg18[%c0_47, %c0_48], %63 {strides = array<i32>} : memref<16x128xf32, #tpu.memory_space<vmem>>, vector<16x128xf32>,
    return
  }
  func.func @transform_0(%arg0: i32) -> (i32, i32, i32) {
    %c0_i32 = arith.constant 0 : i32
    %c0_i32_0 = arith.constant 0 : i32
    %c0_i32_1 = arith.constant 0 : i32
    return %c0_i32, %arg0, %c0_i32_0 : i32, i32, i32
  }
  func.func @transform_1(%arg0: i32) -> (i32, i32, i32) {
    %c0_i32 = arith.constant 0 : i32
    %c0_i32_0 = arith.constant 0 : i32
    %c0_i32_1 = arith.constant 0 : i32
    return %c0_i32, %arg0, %c0_i32_0 : i32, i32, i32
  }
  func.func @transform_2(%arg0: i32) -> (i32, i32) {
    %c0_i32 = arith.constant 0 : i32
    %c0_i32_0 = arith.constant 0 : i32
    %c0_i32_1 = arith.constant 0 : i32
    return %c0_i32, %c0_i32_0 : i32, i32
  }
  func.func @transform_3(%arg0: i32) -> (i32, i32) {
    %c0_i32 = arith.constant 0 : i32
    %c0_i32_0 = arith.constant 0 : i32
    %c0_i32_1 = arith.constant 0 : i32
    return %c0_i32, %c0_i32_0 : i32, i32
  }
  func.func @transform_4(%arg0: i32) -> (i32, i32) {
    %c0_i32 = arith.constant 0 : i32
    %c0_i32_0 = arith.constant 0 : i32
    %c0_i32_1 = arith.constant 0 : i32
    return %c0_i32, %c0_i32_0 : i32, i32
  }
  func.func @transform_5(%arg0: i32) -> (i32, i32) {
    %c0_i32 = arith.constant 0 : i32
    %c0_i32_0 = arith.constant 0 : i32
    %c0_i32_1 = arith.constant 0 : i32
    return %c0_i32, %c0_i32_0 : i32, i32
  }
  func.func @transform_6(%arg0: i32) -> (i32, i32) {
    %c0_i32 = arith.constant 0 : i32
    %c0_i32_0 = arith.constant 0 : i32
    %c0_i32_1 = arith.constant 0 : i32
    return %c0_i32, %c0_i32_0 : i32, i32
  }
  func.func @transform_7(%arg0: i32) -> (i32, i32) {
    %c0_i32 = arith.constant 0 : i32
    %c0_i32_0 = arith.constant 0 : i32
    %c0_i32_1 = arith.constant 0 : i32
    return %c0_i32, %c0_i32_0 : i32, i32
  }
  func.func @transform_8(%arg0: i32) -> (i32, i32) {
    %c0_i32 = arith.constant 0 : i32
    %c0_i32_0 = arith.constant 0 : i32
    %c0_i32_1 = arith.constant 0 : i32
    return %c0_i32, %c0_i32_0 : i32, i32
  }
  func.func @transform_9(%arg0: i32) -> (i32, i32) {
    %c0_i32 = arith.constant 0 : i32
    %c0_i32_0 = arith.constant 0 : i32
    %c0_i32_1 = arith.constant 0 : i32
    return %c0_i32, %c0_i32_0 : i32, i32
  }
  func.func @transform_10(%arg0: i32) -> (i32, i32) {
    %c0_i32 = arith.constant 0 : i32
    %c0_i32_0 = arith.constant 0 : i32
    %c0_i32_1 = arith.constant 0 : i32
    return %c0_i32, %c0_i32_0 : i32, i32
  }
  func.func @transform_11(%arg0: i32) -> (i32, i32) {
    %c0_i32 = arith.constant 0 : i32
    %c0_i32_0 = arith.constant 0 : i32
    %c0_i32_1 = arith.constant 0 : i32
    return %c0_i32, %c0_i32_0 : i32, i32
  }
  func.func @transform_12(%arg0: i32) -> (i32, i32) {
    %c0_i32 = arith.constant 0 : i32
    %c0_i32_0 = arith.constant 0 : i32
    %c0_i32_1 = arith.constant 0 : i32
    return %c0_i32, %c0_i32_0 : i32, i32
  }
  func.func @transform_13(%arg0: i32) -> (i32, i32) {
    %c0_i32 = arith.constant 0 : i32
    %c0_i32_0 = arith.constant 0 : i32
    %c0_i32_1 = arith.constant 0 : i32
    return %c0_i32, %c0_i32_0 : i32, i32
  }
  func.func @transform_14(%arg0: i32) -> (i32, i32) {
    %c0_i32 = arith.constant 0 : i32
    %c0_i32_0 = arith.constant 0 : i32
    %c0_i32_1 = arith.constant 0 : i32
    return %c0_i32, %c0_i32_0 : i32, i32
  }
  func.func @transform_15(%arg0: i32) -> (i32, i32) {
    %c0_i32 = arith.constant 0 : i32
    %c0_i32_0 = arith.constant 0 : i32
    %c0_i32_1 = arith.constant 0 : i32
    return %c0_i32, %c0_i32_0 : i32, i32
  }
  func.func @transform_16(%arg0: i32) -> (i32, i32) {
    %c0_i32 = arith.constant 0 : i32
    %c0_i32_0 = arith.constant 0 : i32
    %c0_i32_1 = arith.constant 0 : i32
    return %c0_i32, %c0_i32_0 : i32, i32
  }
  func.func @transform_17(%arg0: i32) -> (i32, i32) {
    %c0_i32 = arith.constant 0 : i32
    %c0_i32_0 = arith.constant 0 : i32
    return %arg0, %c0_i32 : i32, i32
  }
}

</mosaic_0001>

<llo_original>
// kernel: tpu_custom_call.1
$region0: #{tpu_custom_call.1}
  #allocation0 [shape = 'u32[]', space=smem, size = 0x4, offset = 0x4, fixed_abs, tag = 'smem constant byte address 0x4 - core index']
  #allocation1 [shape = 'u32[144,128]{1,0:T(1,128)}', space=vmem, size = 0x12000, scoped, tag = 'internal scratch']
  %s0 = inlined_call_operand.vmem [shape: bf16[8,32,8], index: 0, kind: input, shape index: {}]
  %s1 = inlined_call_operand.vmem [shape: bf16[16,32,8], index: 1, kind: input, shape index: {}]
  %s2 = inlined_call_operand.vmem [shape: bf16[8,8], index: 2, kind: input, shape index: {}]
  %s3 = inlined_call_operand.vmem [shape: f32[1,8], index: 3, kind: input, shape index: {}]
  %s4 = inlined_call_operand.vmem [shape: f32[1,8], index: 4, kind: input, shape index: {}]
  %s5 = inlined_call_operand.vmem [shape: bf16[8,16], index: 5, kind: input, shape index: {}]
  %s6 = inlined_call_operand.vmem [shape: f32[1,16], index: 6, kind: input, shape index: {}]
  %s7 = inlined_call_operand.vmem [shape: f32[1,16], index: 7, kind: input, shape index: {}]
  %s8 = inlined_call_operand.vmem [shape: bf16[8,8], index: 8, kind: input, shape index: {}]
  %s9 = inlined_call_operand.vmem [shape: f32[1,8], index: 9, kind: input, shape index: {}]
  %s10 = inlined_call_operand.vmem [shape: f32[1,8], index: 10, kind: input, shape index: {}]
  %s11 = inlined_call_operand.vmem [shape: bf16[8,16], index: 11, kind: input, shape index: {}]
  %s12 = inlined_call_operand.vmem [shape: f32[1,16], index: 12, kind: input, shape index: {}]
  %s13 = inlined_call_operand.vmem [shape: f32[1,16], index: 13, kind: input, shape index: {}]
  %s14 = inlined_call_operand.vmem [shape: bf16[16,32], index: 14, kind: input, shape index: {}]
  %s15 = inlined_call_operand.vmem [shape: f32[1,32], index: 15, kind: input, shape index: {}]
  %s16 = inlined_call_operand.vmem [shape: f32[1,32], index: 16, kind: input, shape index: {}]
  %s17 = inlined_call_operand.hbm [shape: f32[32,128], index: 17, kind: output, shape index: {}]
  %s18 = sld [smem:[#allocation0]]
  $region183: #{tpu_custom_call.1} parent=0
    _
  %s20 = ssub.s32 1, %s18
  %s21 = scalar_select 0, %s20, %s18
  $region1: #{tpu_custom_call.1} parent=0
    #allocation2 [shape = 'u8[65536]{0}', space=vmem, size = 0x10000, scoped, tag = 'input window, operand 0']
    #allocation3 [shape = 'u8[131072]{0}', space=vmem, size = 0x20000, scoped, tag = 'input window, operand 1']
    #allocation4 [shape = 'u8[16384]{0}', space=vmem, size = 0x4000, scoped, tag = 'output window, operand 0']
    #allocation5 [shape = 's32[2]{0}', space=sflag, size = 0x8, scoped, tag = 'scoped memory for tpu_custom_call.1']
    %22 = vsyncpa [#allocation5], 0
    %s23 = scalar_lea.sflag [#allocation5], 1
    %24 = vsyncpa %s23, 0
    loop: start=0, step=1, limit=4
    $region2: #{tpu_custom_call.1} parent=1 // loop_pre_header
      _
    $region3: #{tpu_custom_call.1} parent=1 // loop_header
      %s26 = sphi 0, %s30
      %p27 = scmp.ge.s32.totalorder %s26, 4
      %s36 = sphi 0, %s38
      %s39 = sphi 0, %s36
      %s40 = sphi 0, %s39
      %s56 = sphi 0, %s40
      %s62 = sphi 0, %s64
      %s65 = sphi 0, %s62
      %s66 = sphi 0, %s65
      %s82 = sphi 0, %s66
      %s86 = sphi 0, %s86
      %s88 = sphi 0, %s86
      %s89 = sphi 0, %s88
      %s103 = sphi 0, %s89
      %s107 = sphi 0, %s107
      %s109 = sphi 0, %s107
      %s110 = sphi 0, %s109
      %s124 = sphi 0, %s110
      %s128 = sphi 0, %s128
      %s130 = sphi 0, %s128
      %s131 = sphi 0, %s130
      %s145 = sphi 0, %s131
      %s149 = sphi 0, %s149
      %s151 = sphi 0, %s149
      %s152 = sphi 0, %s151
      %s166 = sphi 0, %s152
      %s170 = sphi 0, %s170
      %s172 = sphi 0, %s170
      %s173 = sphi 0, %s172
      %s187 = sphi 0, %s173
      %s191 = sphi 0, %s191
      %s193 = sphi 0, %s191
      %s194 = sphi 0, %s193
      %s208 = sphi 0, %s194
      %s212 = sphi 0, %s212
      %s214 = sphi 0, %s212
      %s215 = sphi 0, %s214
      %s229 = sphi 0, %s215
      %s233 = sphi 0, %s233
      %s235 = sphi 0, %s233
      %s236 = sphi 0, %s235
      %s250 = sphi 0, %s236
      %s254 = sphi 0, %s254
      %s256 = sphi 0, %s254
      %s257 = sphi 0, %s256
      %s271 = sphi 0, %s257
      %s275 = sphi 0, %s275
      %s277 = sphi 0, %s275
      %s278 = sphi 0, %s277
      %s292 = sphi 0, %s278
      %s296 = sphi 0, %s296
      %s298 = sphi 0, %s296
      %s299 = sphi 0, %s298
      %s313 = sphi 0, %s299
      %s317 = sphi 0, %s317
      %s319 = sphi 0, %s317
      %s320 = sphi 0, %s319
      %s334 = sphi 0, %s320
      %s338 = sphi 0, %s338
      %s340 = sphi 0, %s338
      %s341 = sphi 0, %s340
      %s355 = sphi 0, %s341
      %s359 = sphi 0, %s359
      %s361 = sphi 0, %s359
      %s362 = sphi 0, %s361
      %s376 = sphi 0, %s362
      %s380 = sphi 0, %s380
      %s382 = sphi 0, %s380
      %s383 = sphi 0, %s382
      %s397 = sphi 0, %s383
      %s403 = sphi 0, %s405
      %s406 = sphi 0, %s403
      %s407 = sphi 0, %s406
      %s423 = sphi 0, %s407
    $region4: #{tpu_custom_call.1} parent=1 // loop_header_branch
      %29 = sbr.rel (%p27) target = $region8
    $region5: #{tpu_custom_call.1} parent=1 // loop_body
      %s31 = ssub.s32 %s26, 1
      %s32 = ssub.s32 %s26, 2
      %s33 = sadd.s32 %s26, 1
      %s34 = ssub.s32 %s26, %s33
      %p35 = scmp.eq.s32.totalorder %s34, 0
      %s37 = sadd.s32 %s36, 1
      %s38 = scalar_select %p35, %s36, %s37
      %p41 = pneg %p35
      %p42 = scmp.eq.s32.totalorder %s26, 1
      %p43 = por %p41, %p42
      %p44 = scmp.ne.s32.totalorder %s36, %s39
      %p45 = scmp.eq.s32.totalorder %s26, 0
      %p46 = por %p44, %p45
      %p47 = scmp.ne.s32.totalorder %s36, %s39
      %p48 = scmp.eq.s32.totalorder %s31, 1
      %p49 = por %p47, %p48
      %p50 = scmp.ne.s32.totalorder %s39, %s40
      %p51 = scmp.eq.s32.totalorder %s31, 0
      %p52 = por %p50, %p51
      %p53 = scmp.ne.s32.totalorder %s39, %s40
      %p54 = scmp.eq.s32.totalorder %s32, 1
      %p55 = por %p53, %p54
      %p57 = scmp.ne.s32.totalorder %s40, %s56
      %p58 = scmp.eq.s32.totalorder %s32, 0
      %p59 = por %p57, %p58
      %s60 = ssub.s32 %s26, %s33
      %p61 = scmp.eq.s32.totalorder %s60, 0
      %s63 = sadd.s32 %s62, 1
      %s64 = scalar_select %p61, %s62, %s63
      %p67 = pneg %p61
      %p68 = scmp.eq.s32.totalorder %s26, 1
      %p69 = por %p67, %p68
      %p70 = scmp.ne.s32.totalorder %s62, %s65
      %p71 = scmp.eq.s32.totalorder %s26, 0
      %p72 = por %p70, %p71
      %p73 = scmp.ne.s32.totalorder %s62, %s65
      %p74 = scmp.eq.s32.totalorder %s31, 1
      %p75 = por %p73, %p74
      %p76 = scmp.ne.s32.totalorder %s65, %s66
      %p77 = scmp.eq.s32.totalorder %s31, 0
      %p78 = por %p76, %p77
      %p79 = scmp.ne.s32.totalorder %s65, %s66
      %p80 = scmp.eq.s32.totalorder %s32, 1
      %p81 = por %p79, %p80
      %p83 = scmp.ne.s32.totalorder %s66, %s82
      %p84 = scmp.eq.s32.totalorder %s32, 0
      %p85 = por %p83, %p84
      %s87 = sadd.s32 %s86, 1
      %p90 = scmp.eq.s32.totalorder %s26, 1
      %p91 = scmp.ne.s32.totalorder %s86, %s88
      %p92 = scmp.eq.s32.totalorder %s26, 0
      %p93 = por %p91, %p92
      %p94 = scmp.ne.s32.totalorder %s86, %s88
      %p95 = scmp.eq.s32.totalorder %s31, 1
      %p96 = por %p94, %p95
      %p97 = scmp.ne.s32.totalorder %s88, %s89
      %p98 = scmp.eq.s32.totalorder %s31, 0
      %p99 = por %p97, %p98
      %p100 = scmp.ne.s32.totalorder %s88, %s89
      %p101 = scmp.eq.s32.totalorder %s32, 1
      %p102 = por %p100, %p101
      %p104 = scmp.ne.s32.totalorder %s89, %s103
      %p105 = scmp.eq.s32.totalorder %s32, 0
      %p106 = por %p104, %p105
      %s108 = sadd.s32 %s107, 1
      %p111 = scmp.eq.s32.totalorder %s26, 1
      %p112 = scmp.ne.s32.totalorder %s107, %s109
      %p113 = scmp.eq.s32.totalorder %s26, 0
      %p114 = por %p112, %p113
      %p115 = scmp.ne.s32.totalorder %s107, %s109
      %p116 = scmp.eq.s32.totalorder %s31, 1
      %p117 = por %p115, %p116
      %p118 = scmp.ne.s32.totalorder %s109, %s110
      %p119 = scmp.eq.s32.totalorder %s31, 0
      %p120 = por %p118, %p119
      %p121 = scmp.ne.s32.totalorder %s109, %s110
      %p122 = scmp.eq.s32.totalorder %s32, 1
      %p123 = por %p121, %p122
      %p125 = scmp.ne.s32.totalorder %s110, %s124
      %p126 = scmp.eq.s32.totalorder %s32, 0
      %p127 = por %p125, %p126
      %s129 = sadd.s32 %s128, 1
      %p132 = scmp.eq.s32.totalorder %s26, 1
      %p133 = scmp.ne.s32.totalorder %s128, %s130
      %p134 = scmp.eq.s32.totalorder %s26, 0
      %p135 = por %p133, %p134
      %p136 = scmp.ne.s32.totalorder %s128, %s130
      %p137 = scmp.eq.s32.totalorder %s31, 1
      %p138 = por %p136, %p137
      %p139 = scmp.ne.s32.totalorder %s130, %s131
      %p140 = scmp.eq.s32.totalorder %s31, 0
      %p141 = por %p139, %p140
      %p142 = scmp.ne.s32.totalorder %s130, %s131
      %p143 = scmp.eq.s32.totalorder %s32, 1
      %p144 = por %p142, %p143
      %p146 = scmp.ne.s32.totalorder %s131, %s145
      %p147 = scmp.eq.s32.totalorder %s32, 0
      %p148 = por %p146, %p147
      %s150 = sadd.s32 %s149, 1
      %p153 = scmp.eq.s32.totalorder %s26, 1
      %p154 = scmp.ne.s32.totalorder %s149, %s151
      %p155 = scmp.eq.s32.totalorder %s26, 0
      %p156 = por %p154, %p155
      %p157 = scmp.ne.s32.totalorder %s149, %s151
      %p158 = scmp.eq.s32.totalorder %s31, 1
      %p159 = por %p157, %p158
      %p160 = scmp.ne.s32.totalorder %s151, %s152
      %p161 = scmp.eq.s32.totalorder %s31, 0
      %p162 = por %p160, %p161
      %p163 = scmp.ne.s32.totalorder %s151, %s152
      %p164 = scmp.eq.s32.totalorder %s32, 1
      %p165 = por %p163, %p164
      %p167 = scmp.ne.s32.totalorder %s152, %s166
      %p168 = scmp.eq.s32.totalorder %s32, 0
      %p169 = por %p167, %p168
      %s171 = sadd.s32 %s170, 1
      %p174 = scmp.eq.s32.totalorder %s26, 1
      %p175 = scmp.ne.s32.totalorder %s170, %s172
      %p176 = scmp.eq.s32.totalorder %s26, 0
      %p177 = por %p175, %p176
      %p178 = scmp.ne.s32.totalorder %s170, %s172
      %p179 = scmp.eq.s32.totalorder %s31, 1
      %p180 = por %p178, %p179
      %p181 = scmp.ne.s32.totalorder %s172, %s173
      %p182 = scmp.eq.s32.totalorder %s31, 0
      %p183 = por %p181, %p182
      %p184 = scmp.ne.s32.totalorder %s172, %s173
      %p185 = scmp.eq.s32.totalorder %s32, 1
      %p186 = por %p184, %p185
      %p188 = scmp.ne.s32.totalorder %s173, %s187
      %p189 = scmp.eq.s32.totalorder %s32, 0
      %p190 = por %p188, %p189
      %s192 = sadd.s32 %s191, 1
      %p195 = scmp.eq.s32.totalorder %s26, 1
      %p196 = scmp.ne.s32.totalorder %s191, %s193
      %p197 = scmp.eq.s32.totalorder %s26, 0
      %p198 = por %p196, %p197
      %p199 = scmp.ne.s32.totalorder %s191, %s193
      %p200 = scmp.eq.s32.totalorder %s31, 1
      %p201 = por %p199, %p200
      %p202 = scmp.ne.s32.totalorder %s193, %s194
      %p203 = scmp.eq.s32.totalorder %s31, 0
      %p204 = por %p202, %p203
      %p205 = scmp.ne.s32.totalorder %s193, %s194
      %p206 = scmp.eq.s32.totalorder %s32, 1
      %p207 = por %p205, %p206
      %p209 = scmp.ne.s32.totalorder %s194, %s208
      %p210 = scmp.eq.s32.totalorder %s32, 0
      %p211 = por %p209, %p210
      %s213 = sadd.s32 %s212, 1
      %p216 = scmp.eq.s32.totalorder %s26, 1
      %p217 = scmp.ne.s32.totalorder %s212, %s214
      %p218 = scmp.eq.s32.totalorder %s26, 0
      %p219 = por %p217, %p218
      %p220 = scmp.ne.s32.totalorder %s212, %s214
      %p221 = scmp.eq.s32.totalorder %s31, 1
      %p222 = por %p220, %p221
      %p223 = scmp.ne.s32.totalorder %s214, %s215
      %p224 = scmp.eq.s32.totalorder %s31, 0
      %p225 = por %p223, %p224
      %p226 = scmp.ne.s32.totalorder %s214, %s215
      %p227 = scmp.eq.s32.totalorder %s32, 1
      %p228 = por %p226, %p227
      %p230 = scmp.ne.s32.totalorder %s215, %s229
      %p231 = scmp.eq.s32.totalorder %s32, 0
      %p232 = por %p230, %p231
      %s234 = sadd.s32 %s233, 1
      %p237 = scmp.eq.s32.totalorder %s26, 1
      %p238 = scmp.ne.s32.totalorder %s233, %s235
      %p239 = scmp.eq.s32.totalorder %s26, 0
      %p240 = por %p238, %p239
      %p241 = scmp.ne.s32.totalorder %s233, %s235
      %p242 = scmp.eq.s32.totalorder %s31, 1
      %p243 = por %p241, %p242
      %p244 = scmp.ne.s32.totalorder %s235, %s236
      %p245 = scmp.eq.s32.totalorder %s31, 0
      %p246 = por %p244, %p245
      %p247 = scmp.ne.s32.totalorder %s235, %s236
      %p248 = scmp.eq.s32.totalorder %s32, 1
      %p249 = por %p247, %p248
      %p251 = scmp.ne.s32.totalorder %s236, %s250
      %p252 = scmp.eq.s32.totalorder %s32, 0
      %p253 = por %p251, %p252
      %s255 = sadd.s32 %s254, 1
      %p258 = scmp.eq.s32.totalorder %s26, 1
      %p259 = scmp.ne.s32.totalorder %s254, %s256
      %p260 = scmp.eq.s32.totalorder %s26, 0
      %p261 = por %p259, %p260
      %p262 = scmp.ne.s32.totalorder %s254, %s256
      %p263 = scmp.eq.s32.totalorder %s31, 1
      %p264 = por %p262, %p263
      %p265 = scmp.ne.s32.totalorder %s256, %s257
      %p266 = scmp.eq.s32.totalorder %s31, 0
      %p267 = por %p265, %p266
      %p268 = scmp.ne.s32.totalorder %s256, %s257
      %p269 = scmp.eq.s32.totalorder %s32, 1
      %p270 = por %p268, %p269
      %p272 = scmp.ne.s32.totalorder %s257, %s271
      %p273 = scmp.eq.s32.totalorder %s32, 0
      %p274 = por %p272, %p273
      %s276 = sadd.s32 %s275, 1
      %p279 = scmp.eq.s32.totalorder %s26, 1
      %p280 = scmp.ne.s32.totalorder %s275, %s277
      %p281 = scmp.eq.s32.totalorder %s26, 0
      %p282 = por %p280, %p281
      %p283 = scmp.ne.s32.totalorder %s275, %s277
      %p284 = scmp.eq.s32.totalorder %s31, 1
      %p285 = por %p283, %p284
      %p286 = scmp.ne.s32.totalorder %s277, %s278
      %p287 = scmp.eq.s32.totalorder %s31, 0
      %p288 = por %p286, %p287
      %p289 = scmp.ne.s32.totalorder %s277, %s278
      %p290 = scmp.eq.s32.totalorder %s32, 1
      %p291 = por %p289, %p290
      %p293 = scmp.ne.s32.totalorder %s278, %s292
      %p294 = scmp.eq.s32.totalorder %s32, 0
      %p295 = por %p293, %p294
      %s297 = sadd.s32 %s296, 1
      %p300 = scmp.eq.s32.totalorder %s26, 1
      %p301 = scmp.ne.s32.totalorder %s296, %s298
      %p302 = scmp.eq.s32.totalorder %s26, 0
      %p303 = por %p301, %p302
      %p304 = scmp.ne.s32.totalorder %s296, %s298
      %p305 = scmp.eq.s32.totalorder %s31, 1
      %p306 = por %p304, %p305
      %p307 = scmp.ne.s32.totalorder %s298, %s299
      %p308 = scmp.eq.s32.totalorder %s31, 0
      %p309 = por %p307, %p308
      %p310 = scmp.ne.s32.totalorder %s298, %s299
      %p311 = scmp.eq.s32.totalorder %s32, 1
      %p312 = por %p310, %p311
      %p314 = scmp.ne.s32.totalorder %s299, %s313
      %p315 = scmp.eq.s32.totalorder %s32, 0
      %p316 = por %p314, %p315
      %s318 = sadd.s32 %s317, 1
      %p321 = scmp.eq.s32.totalorder %s26, 1
      %p322 = scmp.ne.s32.totalorder %s317, %s319
      %p323 = scmp.eq.s32.totalorder %s26, 0
      %p324 = por %p322, %p323
      %p325 = scmp.ne.s32.totalorder %s317, %s319
      %p326 = scmp.eq.s32.totalorder %s31, 1
      %p327 = por %p325, %p326
      %p328 = scmp.ne.s32.totalorder %s319, %s320
      %p329 = scmp.eq.s32.totalorder %s31, 0
      %p330 = por %p328, %p329
      %p331 = scmp.ne.s32.totalorder %s319, %s320
      %p332 = scmp.eq.s32.totalorder %s32, 1
      %p333 = por %p331, %p332
      %p335 = scmp.ne.s32.totalorder %s320, %s334
      %p336 = scmp.eq.s32.totalorder %s32, 0
      %p337 = por %p335, %p336
      %s339 = sadd.s32 %s338, 1
      %p342 = scmp.eq.s32.totalorder %s26, 1
      %p343 = scmp.ne.s32.totalorder %s338, %s340
      %p344 = scmp.eq.s32.totalorder %s26, 0
      %p345 = por %p343, %p344
      %p346 = scmp.ne.s32.totalorder %s338, %s340
      %p347 = scmp.eq.s32.totalorder %s31, 1
      %p348 = por %p346, %p347
      %p349 = scmp.ne.s32.totalorder %s340, %s341
      %p350 = scmp.eq.s32.totalorder %s31, 0
      %p351 = por %p349, %p350
      %p352 = scmp.ne.s32.totalorder %s340, %s341
      %p353 = scmp.eq.s32.totalorder %s32, 1
      %p354 = por %p352, %p353
      %p356 = scmp.ne.s32.totalorder %s341, %s355
      %p357 = scmp.eq.s32.totalorder %s32, 0
      %p358 = por %p356, %p357
      %s360 = sadd.s32 %s359, 1
      %p363 = scmp.eq.s32.totalorder %s26, 1
      %p364 = scmp.ne.s32.totalorder %s359, %s361
      %p365 = scmp.eq.s32.totalorder %s26, 0
      %p366 = por %p364, %p365
      %p367 = scmp.ne.s32.totalorder %s359, %s361
      %p368 = scmp.eq.s32.totalorder %s31, 1
      %p369 = por %p367, %p368
      %p370 = scmp.ne.s32.totalorder %s361, %s362
      %p371 = scmp.eq.s32.totalorder %s31, 0
      %p372 = por %p370, %p371
      %p373 = scmp.ne.s32.totalorder %s361, %s362
      %p374 = scmp.eq.s32.totalorder %s32, 1
      %p375 = por %p373, %p374
      %p377 = scmp.ne.s32.totalorder %s362, %s376
      %p378 = scmp.eq.s32.totalorder %s32, 0
      %p379 = por %p377, %p378
      %s381 = sadd.s32 %s380, 1
      %p384 = scmp.eq.s32.totalorder %s26, 1
      %p385 = scmp.ne.s32.totalorder %s380, %s382
      %p386 = scmp.eq.s32.totalorder %s26, 0
      %p387 = por %p385, %p386
      %p388 = scmp.ne.s32.totalorder %s380, %s382
      %p389 = scmp.eq.s32.totalorder %s31, 1
      %p390 = por %p388, %p389
      %p391 = scmp.ne.s32.totalorder %s382, %s383
      %p392 = scmp.eq.s32.totalorder %s31, 0
      %p393 = por %p391, %p392
      %p394 = scmp.ne.s32.totalorder %s382, %s383
      %p395 = scmp.eq.s32.totalorder %s32, 1
      %p396 = por %p394, %p395
      %p398 = scmp.ne.s32.totalorder %s383, %s397
      %p399 = scmp.eq.s32.totalorder %s32, 0
      %p400 = por %p398, %p399
      %s401 = ssub.s32 %s26, %s33
      %p402 = scmp.eq.s32.totalorder %s401, 0
      %s404 = sadd.s32 %s403, 1
      %s405 = scalar_select %p402, %s403, %s404
      %p408 = pneg %p402
      %p409 = scmp.eq.s32.totalorder %s26, 1
      %p410 = por %p408, %p409
      %p411 = scmp.ne.s32.totalorder %s403, %s406
      %p412 = scmp.eq.s32.totalorder %s26, 0
      %p413 = por %p411, %p412
      %p414 = scmp.ne.s32.totalorder %s403, %s406
      %p415 = scmp.eq.s32.totalorder %s31, 1
      %p416 = por %p414, %p415
      %p417 = scmp.ne.s32.totalorder %s406, %s407
      %p418 = scmp.eq.s32.totalorder %s31, 0
      %p419 = por %p417, %p418
      %p420 = scmp.ne.s32.totalorder %s406, %s407
      %p421 = scmp.eq.s32.totalorder %s32, 1
      %p422 = por %p420, %p421
      %p424 = scmp.ne.s32.totalorder %s407, %s423
      %p425 = scmp.eq.s32.totalorder %s32, 0
      %p426 = por %p424, %p425
      %p427 = scmp.le.s32.totalorder 1, %s26
      %p428 = scmp.lt.s32.totalorder %s26, 3
      %p429 = pnand %p427, %p428
      %p430 = pneg %p429
      // Predicated region
      $region9: #{tpu_custom_call.1} parent=5 // pred_check
        _
      $region10: #{tpu_custom_call.1} parent=5 // pred_check_branch
        %432 = sbr.rel (%p429) target = $region12
      $region11: #{tpu_custom_call.1} parent=5 // pred_region
        %s433 = ssub.s32 %s26, 1
        // Predicated region
        $region13: #{tpu_custom_call.1} parent=11 // pred_check
          %p434 = pneg %p99
        $region14: #{tpu_custom_call.1} parent=11 // pred_check_branch
          %436 = sbr.rel (%p434) target = $region16
        $region15: #{tpu_custom_call.1} parent=11 // pred_region
          _
        $region16: #{tpu_custom_call.1} parent=11 // pred_fallthru
          _
        // Predicated region
        $region17: #{tpu_custom_call.1} parent=11 // pred_check
          %p437 = pneg %p120
        $region18: #{tpu_custom_call.1} parent=11 // pred_check_branch
          %439 = sbr.rel (%p437) target = $region20
        $region19: #{tpu_custom_call.1} parent=11 // pred_region
          _
        $region20: #{tpu_custom_call.1} parent=11 // pred_fallthru
          _
        // Predicated region
        $region21: #{tpu_custom_call.1} parent=11 // pred_check
          %p440 = pneg %p141
        $region22: #{tpu_custom_call.1} parent=11 // pred_check_branch
          %442 = sbr.rel (%p440) target = $region24
        $region23: #{tpu_custom_call.1} parent=11 // pred_region
          _
        $region24: #{tpu_custom_call.1} parent=11 // pred_fallthru
          _
        // Predicated region
        $region25: #{tpu_custom_call.1} parent=11 // pred_check
          %p443 = pneg %p162
        $region26: #{tpu_custom_call.1} parent=11 // pred_check_branch
          %445 = sbr.rel (%p443) target = $region28
        $region27: #{tpu_custom_call.1} parent=11 // pred_region
          _
        $region28: #{tpu_custom_call.1} parent=11 // pred_fallthru
          _
        // Predicated region
        $region29: #{tpu_custom_call.1} parent=11 // pred_check
          %p446 = pneg %p183
        $region30: #{tpu_custom_call.1} parent=11 // pred_check_branch
          %448 = sbr.rel (%p446) target = $region32
        $region31: #{tpu_custom_call.1} parent=11 // pred_region
          _
        $region32: #{tpu_custom_call.1} parent=11 // pred_fallthru
          _
        // Predicated region
        $region33: #{tpu_custom_call.1} parent=11 // pred_check
          %p449 = pneg %p204
        $region34: #{tpu_custom_call.1} parent=11 // pred_check_branch
          %451 = sbr.rel (%p449) target = $region36
        $region35: #{tpu_custom_call.1} parent=11 // pred_region
          _
        $region36: #{tpu_custom_call.1} parent=11 // pred_fallthru
          _
        // Predicated region
        $region37: #{tpu_custom_call.1} parent=11 // pred_check
          %p452 = pneg %p225
        $region38: #{tpu_custom_call.1} parent=11 // pred_check_branch
          %454 = sbr.rel (%p452) target = $region40
        $region39: #{tpu_custom_call.1} parent=11 // pred_region
          _
        $region40: #{tpu_custom_call.1} parent=11 // pred_fallthru
          _
        // Predicated region
        $region41: #{tpu_custom_call.1} parent=11 // pred_check
          %p455 = pneg %p246
        $region42: #{tpu_custom_call.1} parent=11 // pred_check_branch
          %457 = sbr.rel (%p455) target = $region44
        $region43: #{tpu_custom_call.1} parent=11 // pred_region
          _
        $region44: #{tpu_custom_call.1} parent=11 // pred_fallthru
          _
        // Predicated region
        $region45: #{tpu_custom_call.1} parent=11 // pred_check
          %p458 = pneg %p267
        $region46: #{tpu_custom_call.1} parent=11 // pred_check_branch
          %460 = sbr.rel (%p458) target = $region48
        $region47: #{tpu_custom_call.1} parent=11 // pred_region
          _
        $region48: #{tpu_custom_call.1} parent=11 // pred_fallthru
          _
        // Predicated region
        $region49: #{tpu_custom_call.1} parent=11 // pred_check
          %p461 = pneg %p288
        $region50: #{tpu_custom_call.1} parent=11 // pred_check_branch
          %463 = sbr.rel (%p461) target = $region52
        $region51: #{tpu_custom_call.1} parent=11 // pred_region
          _
        $region52: #{tpu_custom_call.1} parent=11 // pred_fallthru
          _
        // Predicated region
        $region53: #{tpu_custom_call.1} parent=11 // pred_check
          %p464 = pneg %p309
        $region54: #{tpu_custom_call.1} parent=11 // pred_check_branch
          %466 = sbr.rel (%p464) target = $region56
        $region55: #{tpu_custom_call.1} parent=11 // pred_region
          _
        $region56: #{tpu_custom_call.1} parent=11 // pred_fallthru
          _
        // Predicated region
        $region57: #{tpu_custom_call.1} parent=11 // pred_check
          %p467 = pneg %p330
        $region58: #{tpu_custom_call.1} parent=11 // pred_check_branch
          %469 = sbr.rel (%p467) target = $region60
        $region59: #{tpu_custom_call.1} parent=11 // pred_region
          _
        $region60: #{tpu_custom_call.1} parent=11 // pred_fallthru
          _
        // Predicated region
        $region61: #{tpu_custom_call.1} parent=11 // pred_check
          %p470 = pneg %p351
        $region62: #{tpu_custom_call.1} parent=11 // pred_check_branch
          %472 = sbr.rel (%p470) target = $region64
        $region63: #{tpu_custom_call.1} parent=11 // pred_region
          _
        $region64: #{tpu_custom_call.1} parent=11 // pred_fallthru
          _
        // Predicated region
        $region65: #{tpu_custom_call.1} parent=11 // pred_check
          %p473 = pneg %p372
        $region66: #{tpu_custom_call.1} parent=11 // pred_check_branch
          %475 = sbr.rel (%p473) target = $region68
        $region67: #{tpu_custom_call.1} parent=11 // pred_region
          _
        $region68: #{tpu_custom_call.1} parent=11 // pred_fallthru
          _
        // Predicated region
        $region69: #{tpu_custom_call.1} parent=11 // pred_check
          %p476 = pneg %p393
        $region70: #{tpu_custom_call.1} parent=11 // pred_check_branch
          %478 = sbr.rel (%p476) target = $region72
        $region71: #{tpu_custom_call.1} parent=11 // pred_region
          _
        $region72: #{tpu_custom_call.1} parent=11 // pred_fallthru
          _
      $region12: #{tpu_custom_call.1} parent=5 // pred_fallthru
        _
      %p479 = scmp.lt.s32.totalorder %s26, 2
      // Predicated region
      $region73: #{tpu_custom_call.1} parent=5 // pred_check
        %p480 = pneg %p479
      $region74: #{tpu_custom_call.1} parent=5 // pred_check_branch
        %482 = sbr.rel (%p480) target = $region76
      $region75: #{tpu_custom_call.1} parent=5 // pred_region
        // Predicated region
        $region77: #{tpu_custom_call.1} parent=75 // pred_check
          %p483 = pneg %p46
        $region78: #{tpu_custom_call.1} parent=75 // pred_check_branch
          %485 = sbr.rel (%p483) target = $region80
        $region79: #{tpu_custom_call.1} parent=75 // pred_region
          %s486 = sand.u32 %s36, 1
          %s487 = sand.u32 %s36, 1
          %s488 = smul.addr %s487, 64
          %s489 = scalar_lea.vmem [#allocation2], %s488
          %s490 = smul.u32 2, %s26
          %s491 = smul.addr %s490, 4
          %s492 = scalar_lea.vmem %s0, %s491
          // Predicated region
          $region81: #{tpu_custom_call.1} parent=79 // pred_check
            _
          $region82: #{tpu_custom_call.1} parent=79 // pred_check_branch
            %494 = sbr.rel (0) target = $region84
          $region83: #{tpu_custom_call.1} parent=79 // pred_region
            // Predicated region
            $region85: #{tpu_custom_call.1} parent=83 // pred_check
              _
            $region86: #{tpu_custom_call.1} parent=83 // pred_check_branch
              %496 = sbr.rel target = $region88
            $region87: #{tpu_custom_call.1} parent=83 // pred_region
              // Predicated region
              $region100: #{tpu_custom_call.1} parent=87 // pred_check
                _
              $region101: #{tpu_custom_call.1} parent=87 // pred_check_branch
                %541 = sbr.rel (0) target = $region103
              $region102: #{tpu_custom_call.1} parent=87 // pred_region
                loop: start=0, step=1, limit=1
                $region104: #{tpu_custom_call.1} parent=102 // loop_pre_header
                  _
                $region105: #{tpu_custom_call.1} parent=102 // loop_header
                  %s543 = sphi 0, %s547
                  %p544 = scmp.ge.s32.totalorder %s543, 1
                  %s548 = sphi %s492, %s492
                  %s549 = sphi %s489, %s489
                $region106: #{tpu_custom_call.1} parent=102 // loop_header_branch
                  %546 = sbr.rel (%p544) target = $region110
                $region107: #{tpu_custom_call.1} parent=102 // loop_body
                  _
                $region108: #{tpu_custom_call.1} parent=102 // loop_footer
                  %s547 = sadd.s32 1, %s543
                $region109: #{tpu_custom_call.1} parent=102 // loop_footer_branch
                  %542 = sbr.rel target = $region105
                $region110: #{tpu_custom_call.1} parent=102 // loop_exit
                  _
                loop: start=0, step=1, limit=1
                $region111: #{tpu_custom_call.1} parent=102 // loop_pre_header
                  _
                $region112: #{tpu_custom_call.1} parent=102 // loop_header
                  %s552 = sphi 0, %s556
                  %p553 = scmp.ge.s32.totalorder %s552, 1
                  %s557 = sphi %s492, %s492
                  %s558 = sphi %s489, %s489
                $region113: #{tpu_custom_call.1} parent=102 // loop_header_branch
                  %555 = sbr.rel (%p553) target = $region117
                $region114: #{tpu_custom_call.1} parent=102 // loop_body
                  %v559 = vld [vmem:[%s557] sm:$0xf]
                  %560 = vst [vmem:[%s558] sm:$0xf] %v559
                  %v561 = vld [vmem:[%s557 + $0x4] sm:$0xf]
                  %562 = vst [vmem:[%s558 + $0x4] sm:$0xf] %v561
                  %v563 = vld [vmem:[%s557 + $0x10] sm:$0xf]
                  %564 = vst [vmem:[%s558 + $0x8] sm:$0xf] %v563
                  %v565 = vld [vmem:[%s557 + $0x14] sm:$0xf]
                  %566 = vst [vmem:[%s558 + $0xc] sm:$0xf] %v565
                  %v567 = vld [vmem:[%s557 + $0x20] sm:$0xf]
                  %568 = vst [vmem:[%s558 + $0x10] sm:$0xf] %v567
                  %v569 = vld [vmem:[%s557 + $0x24] sm:$0xf]
                  %570 = vst [vmem:[%s558 + $0x14] sm:$0xf] %v569
                  %v571 = vld [vmem:[%s557 + $0x30] sm:$0xf]
                  %572 = vst [vmem:[%s558 + $0x18] sm:$0xf] %v571
                  %v573 = vld [vmem:[%s557 + $0x34] sm:$0xf]
                  %574 = vst [vmem:[%s558 + $0x1c] sm:$0xf] %v573
                  %v575 = vld [vmem:[%s557 + $0x40] sm:$0xf]
                  %576 = vst [vmem:[%s558 + $0x20] sm:$0xf] %v575
                  %v577 = vld [vmem:[%s557 + $0x44] sm:$0xf]
                  %578 = vst [vmem:[%s558 + $0x24] sm:$0xf] %v577
                  %v579 = vld [vmem:[%s557 + $0x50] sm:$0xf]
                  %580 = vst [vmem:[%s558 + $0x28] sm:$0xf] %v579
                  %v581 = vld [vmem:[%s557 + $0x54] sm:$0xf]
                  %582 = vst [vmem:[%s558 + $0x2c] sm:$0xf] %v581
                  %v583 = vld [vmem:[%s557 + $0x60] sm:$0xf]
                  %584 = vst [vmem:[%s558 + $0x30] sm:$0xf] %v583
                  %v585 = vld [vmem:[%s557 + $0x64] sm:$0xf]
                  %586 = vst [vmem:[%s558 + $0x34] sm:$0xf] %v585
                  %v587 = vld [vmem:[%s557 + $0x70] sm:$0xf]
                  %588 = vst [vmem:[%s558 + $0x38] sm:$0xf] %v587
                  %v589 = vld [vmem:[%s557 + $0x74] sm:$0xf]
                  %590 = vst [vmem:[%s558 + $0x3c] sm:$0xf] %v589
                $region115: #{tpu_custom_call.1} parent=102 // loop_footer
                  %s556 = sadd.s32 1, %s552
                $region116: #{tpu_custom_call.1} parent=102 // loop_footer_branch
                  %551 = sbr.rel target = $region112
                $region117: #{tpu_custom_call.1} parent=102 // loop_exit
                  _
              $region103: #{tpu_custom_call.1} parent=87 // pred_fallthru
                _
            $region88: #{tpu_custom_call.1} parent=83 // pred_fallthru
              _
            // Predicated region
            $region89: #{tpu_custom_call.1} parent=83 // pred_check
              _
            $region90: #{tpu_custom_call.1} parent=83 // pred_check_branch
              %498 = sbr.rel (0) target = $region92
            $region91: #{tpu_custom_call.1} parent=83 // pred_region
              loop: start=0, step=1, limit=1
              $region93: #{tpu_custom_call.1} parent=91 // loop_pre_header
                _
              $region94: #{tpu_custom_call.1} parent=91 // loop_header
                %s501 = sphi 0, %s505
                %p502 = scmp.ge.s32.totalorder %s501, 1
                %s506 = sphi %s492, %s492
                %s507 = sphi %s489, %s489
              $region95: #{tpu_custom_call.1} parent=91 // loop_header_branch
                %504 = sbr.rel (%p502) target = $region99
              $region96: #{tpu_custom_call.1} parent=91 // loop_body
                %v508 = vld [vmem:[%s506] sm:$0xf]
                %509 = vst [vmem:[%s507] sm:$0xf] %v508
                %v510 = vld [vmem:[%s506 + $0x4] sm:$0xf]
                %511 = vst [vmem:[%s507 + $0x4] sm:$0xf] %v510
                %v512 = vld [vmem:[%s506 + $0x10] sm:$0xf]
                %513 = vst [vmem:[%s507 + $0x8] sm:$0xf] %v512
                %v514 = vld [vmem:[%s506 + $0x14] sm:$0xf]
                %515 = vst [vmem:[%s507 + $0xc] sm:$0xf] %v514
                %v516 = vld [vmem:[%s506 + $0x20] sm:$0xf]
                %517 = vst [vmem:[%s507 + $0x10] sm:$0xf] %v516
                %v518 = vld [vmem:[%s506 + $0x24] sm:$0xf]
                %519 = vst [vmem:[%s507 + $0x14] sm:$0xf] %v518
                %v520 = vld [vmem:[%s506 + $0x30] sm:$0xf]
                %521 = vst [vmem:[%s507 + $0x18] sm:$0xf] %v520
                %v522 = vld [vmem:[%s506 + $0x34] sm:$0xf]
                %523 = vst [vmem:[%s507 + $0x1c] sm:$0xf] %v522
                %v524 = vld [vmem:[%s506 + $0x40] sm:$0xf]
                %525 = vst [vmem:[%s507 + $0x20] sm:$0xf] %v524
                %v526 = vld [vmem:[%s506 + $0x44] sm:$0xf]
                %527 = vst [vmem:[%s507 + $0x24] sm:$0xf] %v526
                %v528 = vld [vmem:[%s506 + $0x50] sm:$0xf]
                %529 = vst [vmem:[%s507 + $0x28] sm:$0xf] %v528
                %v530 = vld [vmem:[%s506 + $0x54] sm:$0xf]
                %531 = vst [vmem:[%s507 + $0x2c] sm:$0xf] %v530
                %v532 = vld [vmem:[%s506 + $0x60] sm:$0xf]
                %533 = vst [vmem:[%s507 + $0x30] sm:$0xf] %v532
                %v534 = vld [vmem:[%s506 + $0x64] sm:$0xf]
                %535 = vst [vmem:[%s507 + $0x34] sm:$0xf] %v534
                %v536 = vld [vmem:[%s506 + $0x70] sm:$0xf]
                %537 = vst [vmem:[%s507 + $0x38] sm:$0xf] %v536
                %v538 = vld [vmem:[%s506 + $0x74] sm:$0xf]
                %539 = vst [vmem:[%s507 + $0x3c] sm:$0xf] %v538
              $region97: #{tpu_custom_call.1} parent=91 // loop_footer
                %s505 = sadd.s32 1, %s501
              $region98: #{tpu_custom_call.1} parent=91 // loop_footer_branch
                %500 = sbr.rel target = $region94
              $region99: #{tpu_custom_call.1} parent=91 // loop_exit
                _
            $region92: #{tpu_custom_call.1} parent=83 // pred_fallthru
              _
          $region84: #{tpu_custom_call.1} parent=79 // pred_fallthru
            _
          %591 = vnop
        $region80: #{tpu_custom_call.1} parent=75 // pred_fallthru
          _
        // Predicated region
        $region118: #{tpu_custom_call.1} parent=75 // pred_check
          %p592 = pneg %p72
        $region119: #{tpu_custom_call.1} parent=75 // pred_check_branch
          %594 = sbr.rel (%p592) target = $region121
        $region120: #{tpu_custom_call.1} parent=75 // pred_region
          %s595 = sand.u32 %s62, 1
          %s596 = sand.u32 %s62, 1
          %s597 = smul.addr %s596, 128
          %s598 = scalar_lea.vmem [#allocation3], %s597
          %s599 = smul.u32 2, %s26
          %s600 = smul.addr %s599, 4
          %s601 = scalar_lea.vmem %s1, %s600
          // Predicated region
          $region122: #{tpu_custom_call.1} parent=120 // pred_check
            _
          $region123: #{tpu_custom_call.1} parent=120 // pred_check_branch
            %603 = sbr.rel (0) target = $region125
          $region124: #{tpu_custom_call.1} parent=120 // pred_region
            // Predicated region
            $region126: #{tpu_custom_call.1} parent=124 // pred_check
              _
            $region127: #{tpu_custom_call.1} parent=124 // pred_check_branch
              %605 = sbr.rel target = $region129
            $region128: #{tpu_custom_call.1} parent=124 // pred_region
              // Predicated region
              $region141: #{tpu_custom_call.1} parent=128 // pred_check
                _
              $region142: #{tpu_custom_call.1} parent=128 // pred_check_branch
                %682 = sbr.rel (0) target = $region144
              $region143: #{tpu_custom_call.1} parent=128 // pred_region
                loop: start=0, step=1, limit=1
                $region145: #{tpu_custom_call.1} parent=143 // loop_pre_header
                  _
                $region146: #{tpu_custom_call.1} parent=143 // loop_header
                  %s684 = sphi 0, %s688
                  %p685 = scmp.ge.s32.totalorder %s684, 1
                  %s689 = sphi %s601, %s601
                  %s690 = sphi %s598, %s598
                $region147: #{tpu_custom_call.1} parent=143 // loop_header_branch
                  %687 = sbr.rel (%p685) target = $region151
                $region148: #{tpu_custom_call.1} parent=143 // loop_body
                  _
                $region149: #{tpu_custom_call.1} parent=143 // loop_footer
                  %s688 = sadd.s32 1, %s684
                $region150: #{tpu_custom_call.1} parent=143 // loop_footer_branch
                  %683 = sbr.rel target = $region146
                $region151: #{tpu_custom_call.1} parent=143 // loop_exit
                  _
                loop: start=0, step=1, limit=1
                $region152: #{tpu_custom_call.1} parent=143 // loop_pre_header
                  _
                $region153: #{tpu_custom_call.1} parent=143 // loop_header
                  %s693 = sphi 0, %s697
                  %p694 = scmp.ge.s32.totalorder %s693, 1
                  %s698 = sphi %s601, %s601
                  %s699 = sphi %s598, %s598
                $region154: #{tpu_custom_call.1} parent=143 // loop_header_branch
                  %696 = sbr.rel (%p694) target = $region158
                $region155: #{tpu_custom_call.1} parent=143 // loop_body
                  %v700 = vld [vmem:[%s698] sm:$0xf]
                  %701 = vst [vmem:[%s699] sm:$0xf] %v700
                  %v702 = vld [vmem:[%s698 + $0x4] sm:$0xf]
                  %703 = vst [vmem:[%s699 + $0x4] sm:$0xf] %v702
                  %v704 = vld [vmem:[%s698 + $0x10] sm:$0xf]
                  %705 = vst [vmem:[%s699 + $0x8] sm:$0xf] %v704
                  %v706 = vld [vmem:[%s698 + $0x14] sm:$0xf]
                  %707 = vst [vmem:[%s699 + $0xc] sm:$0xf] %v706
                  %v708 = vld [vmem:[%s698 + $0x20] sm:$0xf]
                  %709 = vst [vmem:[%s699 + $0x10] sm:$0xf] %v708
                  %v710 = vld [vmem:[%s698 + $0x24] sm:$0xf]
                  %711 = vst [vmem:[%s699 + $0x14] sm:$0xf] %v710
                  %v712 = vld [vmem:[%s698 + $0x30] sm:$0xf]
                  %713 = vst [vmem:[%s699 + $0x18] sm:$0xf] %v712
                  %v714 = vld [vmem:[%s698 + $0x34] sm:$0xf]
                  %715 = vst [vmem:[%s699 + $0x1c] sm:$0xf] %v714
                  %v716 = vld [vmem:[%s698 + $0x40] sm:$0xf]
                  %717 = vst [vmem:[%s699 + $0x20] sm:$0xf] %v716
                  %v718 = vld [vmem:[%s698 + $0x44] sm:$0xf]
                  %719 = vst [vmem:[%s699 + $0x24] sm:$0xf] %v718
                  %v720 = vld [vmem:[%s698 + $0x50] sm:$0xf]
                  %721 = vst [vmem:[%s699 + $0x28] sm:$0xf] %v720
                  %v722 = vld [vmem:[%s698 + $0x54] sm:$0xf]
                  %723 = vst [vmem:[%s699 + $0x2c] sm:$0xf] %v722
                  %v724 = vld [vmem:[%s698 + $0x60] sm:$0xf]
                  %725 = vst [vmem:[%s699 + $0x30] sm:$0xf] %v724
                  %v726 = vld [vmem:[%s698 + $0x64] sm:$0xf]
                  %727 = vst [vmem:[%s699 + $0x34] sm:$0xf] %v726
                  %v728 = vld [vmem:[%s698 + $0x70] sm:$0xf]
                  %729 = vst [vmem:[%s699 + $0x38] sm:$0xf] %v728
                  %v730 = vld [vmem:[%s698 + $0x74] sm:$0xf]
                  %731 = vst [vmem:[%s699 + $0x3c] sm:$0xf] %v730
                  %v732 = vld [vmem:[%s698 + $0x80] sm:$0xf]
                  %733 = vst [vmem:[%s699 + $0x40] sm:$0xf] %v732
                  %v734 = vld [vmem:[%s698 + $0x84] sm:$0xf]
                  %735 = vst [vmem:[%s699 + $0x44] sm:$0xf] %v734
                  %v736 = vld [vmem:[%s698 + $0x90] sm:$0xf]
                  %737 = vst [vmem:[%s699 + $0x48] sm:$0xf] %v736
                  %v738 = vld [vmem:[%s698 + $0x94] sm:$0xf]
                  %739 = vst [vmem:[%s699 + $0x4c] sm:$0xf] %v738
                  %v740 = vld [vmem:[%s698 + $0xa0] sm:$0xf]
                  %741 = vst [vmem:[%s699 + $0x50] sm:$0xf] %v740
                  %v742 = vld [vmem:[%s698 + $0xa4] sm:$0xf]
                  %743 = vst [vmem:[%s699 + $0x54] sm:$0xf] %v742
                  %v744 = vld [vmem:[%s698 + $0xb0] sm:$0xf]
                  %745 = vst [vmem:[%s699 + $0x58] sm:$0xf] %v744
                  %v746 = vld [vmem:[%s698 + $0xb4] sm:$0xf]
                  %747 = vst [vmem:[%s699 + $0x5c] sm:$0xf] %v746
                  %v748 = vld [vmem:[%s698 + $0xc0] sm:$0xf]
                  %749 = vst [vmem:[%s699 + $0x60] sm:$0xf] %v748
                  %v750 = vld [vmem:[%s698 + $0xc4] sm:$0xf]
                  %751 = vst [vmem:[%s699 + $0x64] sm:$0xf] %v750
                  %v752 = vld [vmem:[%s698 + $0xd0] sm:$0xf]
                  %753 = vst [vmem:[%s699 + $0x68] sm:$0xf] %v752
                  %v754 = vld [vmem:[%s698 + $0xd4] sm:$0xf]
                  %755 = vst [vmem:[%s699 + $0x6c] sm:$0xf] %v754
                  %v756 = vld [vmem:[%s698 + $0xe0] sm:$0xf]
                  %757 = vst [vmem:[%s699 + $0x70] sm:$0xf] %v756
                  %v758 = vld [vmem:[%s698 + $0xe4] sm:$0xf]
                  %759 = vst [vmem:[%s699 + $0x74] sm:$0xf] %v758
                  %v760 = vld [vmem:[%s698 + $0xf0] sm:$0xf]
                  %761 = vst [vmem:[%s699 + $0x78] sm:$0xf] %v760
                  %v762 = vld [vmem:[%s698 + $0xf4] sm:$0xf]
                  %763 = vst [vmem:[%s699 + $0x7c] sm:$0xf] %v762
                $region156: #{tpu_custom_call.1} parent=143 // loop_footer
                  %s697 = sadd.s32 1, %s693
                $region157: #{tpu_custom_call.1} parent=143 // loop_footer_branch
                  %692 = sbr.rel target = $region153
                $region158: #{tpu_custom_call.1} parent=143 // loop_exit
                  _
              $region144: #{tpu_custom_call.1} parent=128 // pred_fallthru
                _
            $region129: #{tpu_custom_call.1} parent=124 // pred_fallthru
              _
            // Predicated region
            $region130: #{tpu_custom_call.1} parent=124 // pred_check
              _
            $region131: #{tpu_custom_call.1} parent=124 // pred_check_branch
              %607 = sbr.rel (0) target = $region133
            $region132: #{tpu_custom_call.1} parent=124 // pred_region
              loop: start=0, step=1, limit=1
              $region134: #{tpu_custom_call.1} parent=132 // loop_pre_header
                _
              $region135: #{tpu_custom_call.1} parent=132 // loop_header
                %s610 = sphi 0, %s614
                %p611 = scmp.ge.s32.totalorder %s610, 1
                %s615 = sphi %s601, %s601
                %s616 = sphi %s598, %s598
              $region136: #{tpu_custom_call.1} parent=132 // loop_header_branch
                %613 = sbr.rel (%p611) target = $region140
              $region137: #{tpu_custom_call.1} parent=132 // loop_body
                %v617 = vld [vmem:[%s615] sm:$0xf]
                %618 = vst [vmem:[%s616] sm:$0xf] %v617
                %v619 = vld [vmem:[%s615 + $0x4] sm:$0xf]
                %620 = vst [vmem:[%s616 + $0x4] sm:$0xf] %v619
                %v621 = vld [vmem:[%s615 + $0x10] sm:$0xf]
                %622 = vst [vmem:[%s616 + $0x8] sm:$0xf] %v621
                %v623 = vld [vmem:[%s615 + $0x14] sm:$0xf]
                %624 = vst [vmem:[%s616 + $0xc] sm:$0xf] %v623
                %v625 = vld [vmem:[%s615 + $0x20] sm:$0xf]
                %626 = vst [vmem:[%s616 + $0x10] sm:$0xf] %v625
                %v627 = vld [vmem:[%s615 + $0x24] sm:$0xf]
                %628 = vst [vmem:[%s616 + $0x14] sm:$0xf] %v627
                %v629 = vld [vmem:[%s615 + $0x30] sm:$0xf]
                %630 = vst [vmem:[%s616 + $0x18] sm:$0xf] %v629
                %v631 = vld [vmem:[%s615 + $0x34] sm:$0xf]
                %632 = vst [vmem:[%s616 + $0x1c] sm:$0xf] %v631
                %v633 = vld [vmem:[%s615 + $0x40] sm:$0xf]
                %634 = vst [vmem:[%s616 + $0x20] sm:$0xf] %v633
                %v635 = vld [vmem:[%s615 + $0x44] sm:$0xf]
                %636 = vst [vmem:[%s616 + $0x24] sm:$0xf] %v635
                %v637 = vld [vmem:[%s615 + $0x50] sm:$0xf]
                %638 = vst [vmem:[%s616 + $0x28] sm:$0xf] %v637
                %v639 = vld [vmem:[%s615 + $0x54] sm:$0xf]
                %640 = vst [vmem:[%s616 + $0x2c] sm:$0xf] %v639
                %v641 = vld [vmem:[%s615 + $0x60] sm:$0xf]
                %642 = vst [vmem:[%s616 + $0x30] sm:$0xf] %v641
                %v643 = vld [vmem:[%s615 + $0x64] sm:$0xf]
                %644 = vst [vmem:[%s616 + $0x34] sm:$0xf] %v643
                %v645 = vld [vmem:[%s615 + $0x70] sm:$0xf]
                %646 = vst [vmem:[%s616 + $0x38] sm:$0xf] %v645
                %v647 = vld [vmem:[%s615 + $0x74] sm:$0xf]
                %648 = vst [vmem:[%s616 + $0x3c] sm:$0xf] %v647
                %v649 = vld [vmem:[%s615 + $0x80] sm:$0xf]
                %650 = vst [vmem:[%s616 + $0x40] sm:$0xf] %v649
                %v651 = vld [vmem:[%s615 + $0x84] sm:$0xf]
                %652 = vst [vmem:[%s616 + $0x44] sm:$0xf] %v651
                %v653 = vld [vmem:[%s615 + $0x90] sm:$0xf]
                %654 = vst [vmem:[%s616 + $0x48] sm:$0xf] %v653
                %v655 = vld [vmem:[%s615 + $0x94] sm:$0xf]
                %656 = vst [vmem:[%s616 + $0x4c] sm:$0xf] %v655
                %v657 = vld [vmem:[%s615 + $0xa0] sm:$0xf]
                %658 = vst [vmem:[%s616 + $0x50] sm:$0xf] %v657
                %v659 = vld [vmem:[%s615 + $0xa4] sm:$0xf]
                %660 = vst [vmem:[%s616 + $0x54] sm:$0xf] %v659
                %v661 = vld [vmem:[%s615 + $0xb0] sm:$0xf]
                %662 = vst [vmem:[%s616 + $0x58] sm:$0xf] %v661
                %v663 = vld [vmem:[%s615 + $0xb4] sm:$0xf]
                %664 = vst [vmem:[%s616 + $0x5c] sm:$0xf] %v663
                %v665 = vld [vmem:[%s615 + $0xc0] sm:$0xf]
                %666 = vst [vmem:[%s616 + $0x60] sm:$0xf] %v665
                %v667 = vld [vmem:[%s615 + $0xc4] sm:$0xf]
                %668 = vst [vmem:[%s616 + $0x64] sm:$0xf] %v667
                %v669 = vld [vmem:[%s615 + $0xd0] sm:$0xf]
                %670 = vst [vmem:[%s616 + $0x68] sm:$0xf] %v669
                %v671 = vld [vmem:[%s615 + $0xd4] sm:$0xf]
                %672 = vst [vmem:[%s616 + $0x6c] sm:$0xf] %v671
                %v673 = vld [vmem:[%s615 + $0xe0] sm:$0xf]
                %674 = vst [vmem:[%s616 + $0x70] sm:$0xf] %v673
                %v675 = vld [vmem:[%s615 + $0xe4] sm:$0xf]
                %676 = vst [vmem:[%s616 + $0x74] sm:$0xf] %v675
                %v677 = vld [vmem:[%s615 + $0xf0] sm:$0xf]
                %678 = vst [vmem:[%s616 + $0x78] sm:$0xf] %v677
                %v679 = vld [vmem:[%s615 + $0xf4] sm:$0xf]
                %680 = vst [vmem:[%s616 + $0x7c] sm:$0xf] %v679
              $region138: #{tpu_custom_call.1} parent=132 // loop_footer
                %s614 = sadd.s32 1, %s610
              $region139: #{tpu_custom_call.1} parent=132 // loop_footer_branch
                %609 = sbr.rel target = $region135
              $region140: #{tpu_custom_call.1} parent=132 // loop_exit
                _
            $region133: #{tpu_custom_call.1} parent=124 // pred_fallthru
              _
          $region125: #{tpu_custom_call.1} parent=120 // pred_fallthru
            _
          %764 = vnop
        $region121: #{tpu_custom_call.1} parent=75 // pred_fallthru
          _
      $region76: #{tpu_custom_call.1} parent=5 // pred_fallthru
        _
      %p765 = scmp.le.s32.totalorder 1, %s26
      %p766 = scmp.lt.s32.totalorder %s26, 3
      %p767 = pnand %p765, %p766
      %p768 = pneg %p767
      // Predicated region
      $region159: #{tpu_custom_call.1} parent=5 // pred_check
        _
      $region160: #{tpu_custom_call.1} parent=5 // pred_check_branch
        %770 = sbr.rel (%p767) target = $region162
      $region161: #{tpu_custom_call.1} parent=5 // pred_region
        %s771 = ssub.s32 %s26, 1
        %s772 = sand.u32 %s39, 1
        %s773 = sand.u32 %s39, 1
        %s774 = smul.addr %s773, 64
        %s775 = scalar_lea.vmem [#allocation2], %s774
        // Predicated region
        $region163: #{tpu_custom_call.1} parent=161 // pred_check
          %p776 = pneg %p52
        $region164: #{tpu_custom_call.1} parent=161 // pred_check_branch
          %778 = sbr.rel (%p776) target = $region166
        $region165: #{tpu_custom_call.1} parent=161 // pred_region
          _
        $region166: #{tpu_custom_call.1} parent=161 // pred_fallthru
          _
        %s779 = sand.u32 %s65, 1
        %s780 = sand.u32 %s65, 1
        %s781 = smul.addr %s780, 128
        %s782 = scalar_lea.vmem [#allocation3], %s781
        // Predicated region
        $region167: #{tpu_custom_call.1} parent=161 // pred_check
          %p783 = pneg %p78
        $region168: #{tpu_custom_call.1} parent=161 // pred_check_branch
          %785 = sbr.rel (%p783) target = $region170
        $region169: #{tpu_custom_call.1} parent=161 // pred_region
          _
        $region170: #{tpu_custom_call.1} parent=161 // pred_fallthru
          _
        %s786 = sand.u32 %s39, 1
        %s787 = sand.u32 %s39, 1
        %s788 = smul.addr %s787, 64
        %s789 = scalar_lea.vmem [#allocation2], %s788
        %p790 = pneg %p52
        %p791 = pneg %p49
        %s792 = sand.u32 %s65, 1
        %s793 = sand.u32 %s65, 1
        %s794 = smul.addr %s793, 128
        %s795 = scalar_lea.vmem [#allocation3], %s794
        %p796 = pneg %p78
        %p797 = pneg %p75
        %p798 = pneg %p99
        %p799 = pneg %p96
        %p800 = pneg %p120
        %p801 = pneg %p117
        %p802 = pneg %p141
        %p803 = pneg %p138
        %p804 = pneg %p162
        %p805 = pneg %p159
        %p806 = pneg %p183
        %p807 = pneg %p180
        %p808 = pneg %p204
        %p809 = pneg %p201
        %p810 = pneg %p225
        %p811 = pneg %p222
        %p812 = pneg %p246
        %p813 = pneg %p243
        %p814 = pneg %p267
        %p815 = pneg %p264
        %p816 = pneg %p288
        %p817 = pneg %p285
        %p818 = pneg %p309
        %p819 = pneg %p306
        %p820 = pneg %p330
        %p821 = pneg %p327
        %p822 = pneg %p351
        %p823 = pneg %p348
        %p824 = pneg %p372
        %p825 = pneg %p369
        %p826 = pneg %p393
        %p827 = pneg %p390
        %p828 = pneg %p419
        %p829 = pneg %p416
        %s830 = sand.u32 %s406, 1
        %s831 = scalar_lea.sflag [#allocation5], %s830
        %s832 = sand.u32 %s406, 1
        %s833 = smul.addr %s832, 16
        %s834 = scalar_lea.vmem [#allocation4], %s833
        %s835 = smul.u32 2, %s31
        %s836 = smul.u32 2, %s31
        %s837 = smul.u32 2, %s31
        %v839 = vld [vmem:[%s775] sm:$0xf]
        %v840 = vld [vmem:[%s775 + $0x4] sm:$0xf]
        %v841 = vld [vmem:[%s775 + $0x8] sm:$0xf]
        %v842 = vld [vmem:[%s775 + $0xc] sm:$0xf]
        %v843 = vld [vmem:[%s775 + $0x10] sm:$0xf]
        %v844 = vld [vmem:[%s775 + $0x14] sm:$0xf]
        %v845 = vld [vmem:[%s775 + $0x18] sm:$0xf]
        %v846 = vld [vmem:[%s775 + $0x1c] sm:$0xf]
        %v847 = vld [vmem:[%s775 + $0x20] sm:$0xf]
        %v848 = vld [vmem:[%s775 + $0x24] sm:$0xf]
        %v849 = vld [vmem:[%s775 + $0x28] sm:$0xf]
        %v850 = vld [vmem:[%s775 + $0x2c] sm:$0xf]
        %v851 = vld [vmem:[%s775 + $0x30] sm:$0xf]
        %v852 = vld [vmem:[%s775 + $0x34] sm:$0xf]
        %v853 = vld [vmem:[%s775 + $0x38] sm:$0xf]
        %v854 = vld [vmem:[%s775 + $0x3c] sm:$0xf]
        %v855 = vld [vmem:[%s2] sm:$0xf]
        %v856 = vld [vmem:[%s3] sm:$0x1]
        %v857 = vld [vmem:[%s4] sm:$0x1]
        %v874 = vunpack.c.l.b16 %v839
        %v875 = vunpack.c.l.b16 %v840
        %v876 = vunpack.c.l.b16 %v841
        %v877 = vunpack.c.l.b16 %v842
        %v878 = vunpack.c.l.b16 %v843
        %v879 = vunpack.c.l.b16 %v844
        %v880 = vunpack.c.l.b16 %v845
        %v881 = vunpack.c.l.b16 %v846
        %v882 = vunpack.c.l.b16 %v847
        %v883 = vunpack.c.l.b16 %v848
        %v884 = vunpack.c.l.b16 %v849
        %v885 = vunpack.c.l.b16 %v850
        %v886 = vunpack.c.l.b16 %v851
        %v887 = vunpack.c.l.b16 %v852
        %v888 = vunpack.c.l.b16 %v853
        %v889 = vunpack.c.l.b16 %v854
        %v890 = vpack.c.b16 %v875, %v874
        %v891 = vpack.c.b16 %v877, %v876
        %v892 = vpack.c.b16 %v879, %v878
        %v893 = vpack.c.b16 %v881, %v880
        %v894 = vpack.c.b16 %v883, %v882
        %v895 = vpack.c.b16 %v885, %v884
        %v896 = vpack.c.b16 %v887, %v886
        %v897 = vpack.c.b16 %v889, %v888
        %vm898 = vcmask 64512
        %v900 = vsel %vm898, %v890, 0
        %v903 = vsel %vm898, %v891, 0
        %v906 = vsel %vm898, %v892, 0
        %v909 = vsel %vm898, %v893, 0
        %v912 = vsel %vm898, %v894, 0
        %v915 = vsel %vm898, %v895, 0
        %v918 = vsel %vm898, %v896, 0
        %v921 = vsel %vm898, %v897, 0
        %vm923 = vcmask 1043456
        %v925 = vsel %vm923, %v855, 0
        %927 = vmatprep.subr.bf16.mxu0 0
        %928 = vmatpush1.bf16.msra.mxu0 %v925
        %929 = vmatprep.subr.bf16.mxu0 0
        %930 = vmatpush1.bf16.msra.mxu0 0
        %931 = vmatprep.subr.bf16.mxu0 0
        %932 = vmatpush1.bf16.msra.mxu0 0
        %933 = vmatprep.subr.bf16.mxu0 0
        %934 = vmatpush1.bf16.msra.mxu0 0
        %935 = vmatprep.subr.bf16.mxu0 0
        %936 = vmatpush1.bf16.msra.mxu0 0
        %937 = vmatprep.subr.bf16.mxu0 0
        %938 = vmatpush1.bf16.msra.mxu0 0
        %939 = vmatprep.subr.bf16.mxu0 0
        %940 = vmatpush1.bf16.msra.mxu0 0
        %941 = vmatprep.subr.bf16.mxu0 0
        %942 = vmatpush1.bf16.msra.mxu0 0
        %943 = vmatprep.subr.bf16.mxu0 0
        %944 = vmatpush1.bf16.msra.mxu0 0
        %945 = vmatprep.subr.bf16.mxu0 0
        %946 = vmatpush1.bf16.msra.mxu0 0
        %947 = vmatprep.subr.bf16.mxu0 0
        %948 = vmatpush1.bf16.msra.mxu0 0
        %949 = vmatprep.subr.bf16.mxu0 0
        %950 = vmatpush1.bf16.msra.mxu0 0
        %951 = vmatprep.subr.bf16.mxu0 0
        %952 = vmatpush1.bf16.msra.mxu0 0
        %953 = vmatprep.subr.bf16.mxu0 0
        %954 = vmatpush1.bf16.msra.mxu0 0
        %955 = vmatprep.subr.bf16.mxu0 0
        %956 = vmatpush1.bf16.msra.mxu0 0
        %957 = vmatprep.subr.bf16.mxu0 0
        %958 = vmatpush1.bf16.msra.mxu0 0
        %959 = vmatprep.mubr.bf16.mxu0 0
        %960 = vmatmul.mubr.bf16.gmra.mrb[0].mxu0 %v900
        %v961 = vpop.f32.mrb[0].mxu0
        %v962 = vadd.f32 0.0, %v961
        %v963 = vpop.f32.mrb[0].mxu0
        %v964 = vpop.f32.mrb[0].mxu0
        %v965 = vadd.f32 0.0, %v964
        %v966 = vpop.f32.mrb[0].mxu0
        %967 = vmatprep.mubr.bf16.mxu0 0
        %968 = vmatmul.mubr.bf16.gmra.mrb[0].mxu0 %v903
        %v969 = vpop.f32.mrb[0].mxu0
        %v970 = vadd.f32 0.0, %v969
        %v971 = vpop.f32.mrb[0].mxu0
        %v972 = vpop.f32.mrb[0].mxu0
        %v973 = vadd.f32 0.0, %v972
        %v974 = vpop.f32.mrb[0].mxu0
        %975 = vmatprep.mubr.bf16.mxu0 0
        %976 = vmatmul.mubr.bf16.gmra.mrb[0].mxu0 %v906
        %v977 = vpop.f32.mrb[0].mxu0
        %v978 = vadd.f32 0.0, %v977
        %v979 = vpop.f32.mrb[0].mxu0
        %v980 = vpop.f32.mrb[0].mxu0
        %v981 = vadd.f32 0.0, %v980
        %v982 = vpop.f32.mrb[0].mxu0
        %983 = vmatprep.mubr.bf16.mxu0 0
        %984 = vmatmul.mubr.bf16.gmra.mrb[0].mxu0 %v909
        %v985 = vpop.f32.mrb[0].mxu0
        %v986 = vadd.f32 0.0, %v985
        %v987 = vpop.f32.mrb[0].mxu0
        %v988 = vpop.f32.mrb[0].mxu0
        %v989 = vadd.f32 0.0, %v988
        %v990 = vpop.f32.mrb[0].mxu0
        %991 = vmatprep.mubr.bf16.mxu0 0
        %992 = vmatmul.mubr.bf16.gmra.mrb[0].mxu0 %v912
        %v993 = vpop.f32.mrb[0].mxu0
        %v994 = vadd.f32 0.0, %v993
        %v995 = vpop.f32.mrb[0].mxu0
        %v996 = vpop.f32.mrb[0].mxu0
        %v997 = vadd.f32 0.0, %v996
        %v998 = vpop.f32.mrb[0].mxu0
        %999 = vmatprep.mubr.bf16.mxu0 0
        %1000 = vmatmul.mubr.bf16.gmra.mrb[0].mxu0 %v915
        %v1001 = vpop.f32.mrb[0].mxu0
        %v1002 = vadd.f32 0.0, %v1001
        %v1003 = vpop.f32.mrb[0].mxu0
        %v1004 = vpop.f32.mrb[0].mxu0
        %v1005 = vadd.f32 0.0, %v1004
        %v1006 = vpop.f32.mrb[0].mxu0
        %1007 = vmatprep.mubr.bf16.mxu0 0
        %1008 = vmatmul.mubr.bf16.gmra.mrb[0].mxu0 %v918
        %v1009 = vpop.f32.mrb[0].mxu0
        %v1010 = vadd.f32 0.0, %v1009
        %v1011 = vpop.f32.mrb[0].mxu0
        %v1012 = vpop.f32.mrb[0].mxu0
        %v1013 = vadd.f32 0.0, %v1012
        %v1014 = vpop.f32.mrb[0].mxu0
        %1015 = vmatprep.mubr.bf16.mxu0 0
        %1016 = vmatmul.mubr.bf16.gmra.mrb[0].mxu0 %v921
        %v1017 = vpop.f32.mrb[0].mxu0
        %v1018 = vadd.f32 0.0, %v1017
        %v1019 = vpop.f32.mrb[0].mxu0
        %v1020 = vpop.f32.mrb[0].mxu0
        %v1021 = vadd.f32 0.0, %v1020
        %v1022 = vpop.f32.mrb[0].mxu0
        %1023 = vdwg.mxu0
        %v1025 = vlaneseq
        %v1026 = vshrl.u32 %v1025, 7
        %v1027 = vsub.s32 0, %v1026
        %v1028 = vrot.slane %v856, %v1027
        %v1030 = vmul.f32 %v962, %v1028
        %v1031 = vmul.f32 %v965, %v1028
        %v1032 = vmul.f32 %v970, %v1028
        %v1033 = vmul.f32 %v973, %v1028
        %v1034 = vmul.f32 %v978, %v1028
        %v1035 = vmul.f32 %v981, %v1028
        %v1036 = vmul.f32 %v986, %v1028
        %v1037 = vmul.f32 %v989, %v1028
        %v1038 = vmul.f32 %v994, %v1028
        %v1039 = vmul.f32 %v997, %v1028
        %v1040 = vmul.f32 %v1002, %v1028
        %v1041 = vmul.f32 %v1005, %v1028
        %v1042 = vmul.f32 %v1010, %v1028
        %v1043 = vmul.f32 %v1013, %v1028
        %v1044 = vmul.f32 %v1018, %v1028
        %v1045 = vmul.f32 %v1021, %v1028
        %v1047 = vlaneseq
        %v1048 = vshrl.u32 %v1047, 7
        %v1049 = vsub.s32 0, %v1048
        %v1050 = vrot.slane %v857, %v1049
        %v1052 = vadd.f32 %v1030, %v1050
        %v1053 = vadd.f32 %v1031, %v1050
        %v1054 = vadd.f32 %v1032, %v1050
        %v1055 = vadd.f32 %v1033, %v1050
        %v1056 = vadd.f32 %v1034, %v1050
        %v1057 = vadd.f32 %v1035, %v1050
        %v1058 = vadd.f32 %v1036, %v1050
        %v1059 = vadd.f32 %v1037, %v1050
        %v1060 = vadd.f32 %v1038, %v1050
        %v1061 = vadd.f32 %v1039, %v1050
        %v1062 = vadd.f32 %v1040, %v1050
        %v1063 = vadd.f32 %v1041, %v1050
        %v1064 = vadd.f32 %v1042, %v1050
        %v1065 = vadd.f32 %v1043, %v1050
        %v1066 = vadd.f32 %v1044, %v1050
        %v1067 = vadd.f32 %v1045, %v1050
        %v1068 = vmax.f32 %v1052, 0.0
        %v1069 = vmax.f32 %v1053, 0.0
        %v1070 = vmax.f32 %v1054, 0.0
        %v1071 = vmax.f32 %v1055, 0.0
        %v1072 = vmax.f32 %v1056, 0.0
        %v1073 = vmax.f32 %v1057, 0.0
        %v1074 = vmax.f32 %v1058, 0.0
        %v1075 = vmax.f32 %v1059, 0.0
        %v1076 = vmax.f32 %v1060, 0.0
        %v1077 = vmax.f32 %v1061, 0.0
        %v1078 = vmax.f32 %v1062, 0.0
        %v1079 = vmax.f32 %v1063, 0.0
        %v1080 = vmax.f32 %v1064, 0.0
        %v1081 = vmax.f32 %v1065, 0.0
        %v1082 = vmax.f32 %v1066, 0.0
        %v1083 = vmax.f32 %v1067, 0.0
        %v1084 = vpack.c.bf16 %v1069, %v1068
        %v1085 = vpack.c.bf16 %v1071, %v1070
        %v1086 = vpack.c.bf16 %v1073, %v1072
        %v1087 = vpack.c.bf16 %v1075, %v1074
        %v1088 = vpack.c.bf16 %v1077, %v1076
        %v1089 = vpack.c.bf16 %v1079, %v1078
        %v1090 = vpack.c.bf16 %v1081, %v1080
        %v1091 = vpack.c.bf16 %v1083, %v1082
        %v1092 = vld [vmem:[%s5] sm:$0xf]
        %v1093 = vld [vmem:[%s6] sm:$0x1]
        %v1094 = vld [vmem:[%s7] sm:$0x1]
        %v1096 = vsel %vm898, %v1084, 0
        %v1099 = vsel %vm898, %v1085, 0
        %v1102 = vsel %vm898, %v1086, 0
        %v1105 = vsel %vm898, %v1087, 0
        %v1108 = vsel %vm898, %v1088, 0
        %v1111 = vsel %vm898, %v1089, 0
        %v1114 = vsel %vm898, %v1090, 0
        %v1117 = vsel %vm898, %v1091, 0
        %v1120 = vsel %vm923, %v1092, 0
        %1122 = vmatprep.subr.bf16.mxu0 0
        %1123 = vmatpush1.bf16.msra.mxu0 %v1120
        %1124 = vmatprep.subr.bf16.mxu0 0
        %1125 = vmatpush1.bf16.msra.mxu0 0
        %1126 = vmatprep.subr.bf16.mxu0 0
        %1127 = vmatpush1.bf16.msra.mxu0 0
        %1128 = vmatprep.subr.bf16.mxu0 0
        %1129 = vmatpush1.bf16.msra.mxu0 0
        %1130 = vmatprep.subr.bf16.mxu0 0
        %1131 = vmatpush1.bf16.msra.mxu0 0
        %1132 = vmatprep.subr.bf16.mxu0 0
        %1133 = vmatpush1.bf16.msra.mxu0 0
        %1134 = vmatprep.subr.bf16.mxu0 0
        %1135 = vmatpush1.bf16.msra.mxu0 0
        %1136 = vmatprep.subr.bf16.mxu0 0
        %1137 = vmatpush1.bf16.msra.mxu0 0
        %1138 = vmatprep.subr.bf16.mxu0 0
        %1139 = vmatpush1.bf16.msra.mxu0 0
        %1140 = vmatprep.subr.bf16.mxu0 0
        %1141 = vmatpush1.bf16.msra.mxu0 0
        %1142 = vmatprep.subr.bf16.mxu0 0
        %1143 = vmatpush1.bf16.msra.mxu0 0
        %1144 = vmatprep.subr.bf16.mxu0 0
        %1145 = vmatpush1.bf16.msra.mxu0 0
        %1146 = vmatprep.subr.bf16.mxu0 0
        %1147 = vmatpush1.bf16.msra.mxu0 0
        %1148 = vmatprep.subr.bf16.mxu0 0
        %1149 = vmatpush1.bf16.msra.mxu0 0
        %1150 = vmatprep.subr.bf16.mxu0 0
        %1151 = vmatpush1.bf16.msra.mxu0 0
        %1152 = vmatprep.subr.bf16.mxu0 0
        %1153 = vmatpush1.bf16.msra.mxu0 0
        %1154 = vmatprep.mubr.bf16.mxu0 0
        %1155 = vmatmul.mubr.bf16.gmra.mrb[0].mxu0 %v1096
        %v1156 = vpop.f32.mrb[0].mxu0
        %v1157 = vadd.f32 0.0, %v1156
        %v1158 = vpop.f32.mrb[0].mxu0
        %v1159 = vpop.f32.mrb[0].mxu0
        %v1160 = vadd.f32 0.0, %v1159
        %v1161 = vpop.f32.mrb[0].mxu0
        %1162 = vmatprep.mubr.bf16.mxu0 0
        %1163 = vmatmul.mubr.bf16.gmra.mrb[0].mxu0 %v1099
        %v1164 = vpop.f32.mrb[0].mxu0
        %v1165 = vadd.f32 0.0, %v1164
        %v1166 = vpop.f32.mrb[0].mxu0
        %v1167 = vpop.f32.mrb[0].mxu0
        %v1168 = vadd.f32 0.0, %v1167
        %v1169 = vpop.f32.mrb[0].mxu0
        %1170 = vmatprep.mubr.bf16.mxu0 0
        %1171 = vmatmul.mubr.bf16.gmra.mrb[0].mxu0 %v1102
        %v1172 = vpop.f32.mrb[0].mxu0
        %v1173 = vadd.f32 0.0, %v1172
        %v1174 = vpop.f32.mrb[0].mxu0
        %v1175 = vpop.f32.mrb[0].mxu0
        %v1176 = vadd.f32 0.0, %v1175
        %v1177 = vpop.f32.mrb[0].mxu0
        %1178 = vmatprep.mubr.bf16.mxu0 0
        %1179 = vmatmul.mubr.bf16.gmra.mrb[0].mxu0 %v1105
        %v1180 = vpop.f32.mrb[0].mxu0
        %v1181 = vadd.f32 0.0, %v1180
        %v1182 = vpop.f32.mrb[0].mxu0
        %v1183 = vpop.f32.mrb[0].mxu0
        %v1184 = vadd.f32 0.0, %v1183
        %v1185 = vpop.f32.mrb[0].mxu0
        %1186 = vmatprep.mubr.bf16.mxu0 0
        %1187 = vmatmul.mubr.bf16.gmra.mrb[0].mxu0 %v1108
        %v1188 = vpop.f32.mrb[0].mxu0
        %v1189 = vadd.f32 0.0, %v1188
        %v1190 = vpop.f32.mrb[0].mxu0
        %v1191 = vpop.f32.mrb[0].mxu0
        %v1192 = vadd.f32 0.0, %v1191
        %v1193 = vpop.f32.mrb[0].mxu0
        %1194 = vmatprep.mubr.bf16.mxu0 0
        %1195 = vmatmul.mubr.bf16.gmra.mrb[0].mxu0 %v1111
        %v1196 = vpop.f32.mrb[0].mxu0
        %v1197 = vadd.f32 0.0, %v1196
        %v1198 = vpop.f32.mrb[0].mxu0
        %v1199 = vpop.f32.mrb[0].mxu0
        %v1200 = vadd.f32 0.0, %v1199
        %v1201 = vpop.f32.mrb[0].mxu0
        %1202 = vmatprep.mubr.bf16.mxu0 0
        %1203 = vmatmul.mubr.bf16.gmra.mrb[0].mxu0 %v1114
        %v1204 = vpop.f32.mrb[0].mxu0
        %v1205 = vadd.f32 0.0, %v1204
        %v1206 = vpop.f32.mrb[0].mxu0
        %v1207 = vpop.f32.mrb[0].mxu0
        %v1208 = vadd.f32 0.0, %v1207
        %v1209 = vpop.f32.mrb[0].mxu0
        %1210 = vmatprep.mubr.bf16.mxu0 0
        %1211 = vmatmul.mubr.bf16.gmra.mrb[0].mxu0 %v1117
        %v1212 = vpop.f32.mrb[0].mxu0
        %v1213 = vadd.f32 0.0, %v1212
        %v1214 = vpop.f32.mrb[0].mxu0
        %v1215 = vpop.f32.mrb[0].mxu0
        %v1216 = vadd.f32 0.0, %v1215
        %v1217 = vpop.f32.mrb[0].mxu0
        %1218 = vdwg.mxu0
        %v1220 = vlaneseq
        %v1221 = vshrl.u32 %v1220, 7
        %v1222 = vsub.s32 0, %v1221
        %v1223 = vrot.slane %v1093, %v1222
        %v1225 = vmul.f32 %v1157, %v1223
        %v1226 = vmul.f32 %v1160, %v1223
        %v1227 = vmul.f32 %v1165, %v1223
        %v1228 = vmul.f32 %v1168, %v1223
        %v1229 = vmul.f32 %v1173, %v1223
        %v1230 = vmul.f32 %v1176, %v1223
        %v1231 = vmul.f32 %v1181, %v1223
        %v1232 = vmul.f32 %v1184, %v1223
        %v1233 = vmul.f32 %v1189, %v1223
        %v1234 = vmul.f32 %v1192, %v1223
        %v1235 = vmul.f32 %v1197, %v1223
        %v1236 = vmul.f32 %v1200, %v1223
        %v1237 = vmul.f32 %v1205, %v1223
        %v1238 = vmul.f32 %v1208, %v1223
        %v1239 = vmul.f32 %v1213, %v1223
        %v1240 = vmul.f32 %v1216, %v1223
        %v1242 = vlaneseq
        %v1243 = vshrl.u32 %v1242, 7
        %v1244 = vsub.s32 0, %v1243
        %v1245 = vrot.slane %v1094, %v1244
        %v1247 = vadd.f32 %v1225, %v1245
        %v1248 = vadd.f32 %v1226, %v1245
        %v1249 = vadd.f32 %v1227, %v1245
        %v1250 = vadd.f32 %v1228, %v1245
        %v1251 = vadd.f32 %v1229, %v1245
        %v1252 = vadd.f32 %v1230, %v1245
        %v1253 = vadd.f32 %v1231, %v1245
        %v1254 = vadd.f32 %v1232, %v1245
        %v1255 = vadd.f32 %v1233, %v1245
        %v1256 = vadd.f32 %v1234, %v1245
        %v1257 = vadd.f32 %v1235, %v1245
        %v1258 = vadd.f32 %v1236, %v1245
        %v1259 = vadd.f32 %v1237, %v1245
        %v1260 = vadd.f32 %v1238, %v1245
        %v1261 = vadd.f32 %v1239, %v1245
        %v1262 = vadd.f32 %v1240, %v1245
        %v1263 = vmax.f32 %v1247, 0.0
        %v1264 = vmax.f32 %v1248, 0.0
        %v1265 = vmax.f32 %v1249, 0.0
        %v1266 = vmax.f32 %v1250, 0.0
        %v1267 = vmax.f32 %v1251, 0.0
        %v1268 = vmax.f32 %v1252, 0.0
        %v1269 = vmax.f32 %v1253, 0.0
        %v1270 = vmax.f32 %v1254, 0.0
        %v1271 = vmax.f32 %v1255, 0.0
        %v1272 = vmax.f32 %v1256, 0.0
        %v1273 = vmax.f32 %v1257, 0.0
        %v1274 = vmax.f32 %v1258, 0.0
        %v1275 = vmax.f32 %v1259, 0.0
        %v1276 = vmax.f32 %v1260, 0.0
        %v1277 = vmax.f32 %v1261, 0.0
        %v1278 = vmax.f32 %v1262, 0.0
        %vm1279 = vcmask 130048
        %v1280 = vsel %vm1279, %v1263, -inf
        %v1281 = vsel %vm1279, %v1265, -inf
        %v1282 = vsel %vm1279, %v1267, -inf
        %v1283 = vmax.f32 %v1280, %v1282
        %v1284 = vsel %vm1279, %v1269, -inf
        %v1285 = vmax.f32 %v1281, %v1284
        %v1286 = vsel %vm1279, %v1271, -inf
        %v1287 = vmax.f32 %v1283, %v1286
        %v1288 = vsel %vm1279, %v1273, -inf
        %v1289 = vmax.f32 %v1285, %v1288
        %v1290 = vsel %vm1279, %v1275, -inf
        %v1291 = vmax.f32 %v1287, %v1290
        %v1292 = vsel %vm1279, %v1277, -inf
        %v1293 = vmax.f32 %v1289, %v1292
        %v1294 = vmax.f32 %v1291, %v1293
        %v1295 = vsel %vm1279, %v1264, -inf
        %v1296 = vsel %vm1279, %v1266, -inf
        %v1297 = vsel %vm1279, %v1268, -inf
        %v1298 = vmax.f32 %v1295, %v1297
        %v1299 = vsel %vm1279, %v1270, -inf
        %v1300 = vmax.f32 %v1296, %v1299
        %v1301 = vsel %vm1279, %v1272, -inf
        %v1302 = vmax.f32 %v1298, %v1301
        %v1303 = vsel %vm1279, %v1274, -inf
        %v1304 = vmax.f32 %v1300, %v1303
        %v1305 = vsel %vm1279, %v1276, -inf
        %v1306 = vmax.f32 %v1302, %v1305
        %v1307 = vsel %vm1279, %v1278, -inf
        %v1308 = vmax.f32 %v1304, %v1307
        %v1309 = vmax.f32 %v1306, %v1308
        %v1310 = vld [vmem:[%s782] sm:$0xf]
        %v1311 = vld [vmem:[%s782 + $0x4] sm:$0xf]
        %v1312 = vld [vmem:[%s782 + $0x8] sm:$0xf]
        %v1313 = vld [vmem:[%s782 + $0xc] sm:$0xf]
        %v1314 = vld [vmem:[%s782 + $0x10] sm:$0xf]
        %v1315 = vld [vmem:[%s782 + $0x14] sm:$0xf]
        %v1316 = vld [vmem:[%s782 + $0x18] sm:$0xf]
        %v1317 = vld [vmem:[%s782 + $0x1c] sm:$0xf]
        %v1318 = vld [vmem:[%s782 + $0x20] sm:$0xf]
        %v1319 = vld [vmem:[%s782 + $0x24] sm:$0xf]
        %v1320 = vld [vmem:[%s782 + $0x28] sm:$0xf]
        %v1321 = vld [vmem:[%s782 + $0x2c] sm:$0xf]
        %v1322 = vld [vmem:[%s782 + $0x30] sm:$0xf]
        %v1323 = vld [vmem:[%s782 + $0x34] sm:$0xf]
        %v1324 = vld [vmem:[%s782 + $0x38] sm:$0xf]
        %v1325 = vld [vmem:[%s782 + $0x3c] sm:$0xf]
        %v1326 = vld [vmem:[%s782 + $0x40] sm:$0xf]
        %v1327 = vld [vmem:[%s782 + $0x44] sm:$0xf]
        %v1328 = vld [vmem:[%s782 + $0x48] sm:$0xf]
        %v1329 = vld [vmem:[%s782 + $0x4c] sm:$0xf]
        %v1330 = vld [vmem:[%s782 + $0x50] sm:$0xf]
        %v1331 = vld [vmem:[%s782 + $0x54] sm:$0xf]
        %v1332 = vld [vmem:[%s782 + $0x58] sm:$0xf]
        %v1333 = vld [vmem:[%s782 + $0x5c] sm:$0xf]
        %v1334 = vld [vmem:[%s782 + $0x60] sm:$0xf]
        %v1335 = vld [vmem:[%s782 + $0x64] sm:$0xf]
        %v1336 = vld [vmem:[%s782 + $0x68] sm:$0xf]
        %v1337 = vld [vmem:[%s782 + $0x6c] sm:$0xf]
        %v1338 = vld [vmem:[%s782 + $0x70] sm:$0xf]
        %v1339 = vld [vmem:[%s782 + $0x74] sm:$0xf]
        %v1340 = vld [vmem:[%s782 + $0x78] sm:$0xf]
        %v1341 = vld [vmem:[%s782 + $0x7c] sm:$0xf]
        %v1342 = vld [vmem:[%s8] sm:$0xf]
        %v1343 = vld [vmem:[%s9] sm:$0x1]
        %v1344 = vld [vmem:[%s10] sm:$0x1]
        %v1377 = vunpack.c.l.b16 %v1310
        %v1378 = vunpack.c.l.b16 %v1311
        %v1379 = vunpack.c.l.b16 %v1312
        %v1380 = vunpack.c.l.b16 %v1313
        %v1381 = vunpack.c.l.b16 %v1314
        %v1382 = vunpack.c.l.b16 %v1315
        %v1383 = vunpack.c.l.b16 %v1316
        %v1384 = vunpack.c.l.b16 %v1317
        %v1385 = vunpack.c.l.b16 %v1318
        %v1386 = vunpack.c.l.b16 %v1319
        %v1387 = vunpack.c.l.b16 %v1320
        %v1388 = vunpack.c.l.b16 %v1321
        %v1389 = vunpack.c.l.b16 %v1322
        %v1390 = vunpack.c.l.b16 %v1323
        %v1391 = vunpack.c.l.b16 %v1324
        %v1392 = vunpack.c.l.b16 %v1325
        %v1393 = vunpack.c.l.b16 %v1326
        %v1394 = vunpack.c.l.b16 %v1327
        %v1395 = vunpack.c.l.b16 %v1328
        %v1396 = vunpack.c.l.b16 %v1329
        %v1397 = vunpack.c.l.b16 %v1330
        %v1398 = vunpack.c.l.b16 %v1331
        %v1399 = vunpack.c.l.b16 %v1332
        %v1400 = vunpack.c.l.b16 %v1333
        %v1401 = vunpack.c.l.b16 %v1334
        %v1402 = vunpack.c.l.b16 %v1335
        %v1403 = vunpack.c.l.b16 %v1336
        %v1404 = vunpack.c.l.b16 %v1337
        %v1405 = vunpack.c.l.b16 %v1338
        %v1406 = vunpack.c.l.b16 %v1339
        %v1407 = vunpack.c.l.b16 %v1340
        %v1408 = vunpack.c.l.b16 %v1341
        %v1409 = vpack.c.b16 %v1378, %v1377
        %v1410 = vpack.c.b16 %v1380, %v1379
        %v1411 = vpack.c.b16 %v1382, %v1381
        %v1412 = vpack.c.b16 %v1384, %v1383
        %v1413 = vpack.c.b16 %v1386, %v1385
        %v1414 = vpack.c.b16 %v1388, %v1387
        %v1415 = vpack.c.b16 %v1390, %v1389
        %v1416 = vpack.c.b16 %v1392, %v1391
        %v1417 = vpack.c.b16 %v1394, %v1393
        %v1418 = vpack.c.b16 %v1396, %v1395
        %v1419 = vpack.c.b16 %v1398, %v1397
        %v1420 = vpack.c.b16 %v1400, %v1399
        %v1421 = vpack.c.b16 %v1402, %v1401
        %v1422 = vpack.c.b16 %v1404, %v1403
        %v1423 = vpack.c.b16 %v1406, %v1405
        %v1424 = vpack.c.b16 %v1408, %v1407
        %v1426 = vsel %vm898, %v1409, 0
        %v1429 = vsel %vm898, %v1410, 0
        %v1432 = vsel %vm898, %v1411, 0
        %v1435 = vsel %vm898, %v1412, 0
        %v1438 = vsel %vm898, %v1413, 0
        %v1441 = vsel %vm898, %v1414, 0
        %v1444 = vsel %vm898, %v1415, 0
        %v1447 = vsel %vm898, %v1416, 0
        %v1450 = vsel %vm898, %v1417, 0
        %v1453 = vsel %vm898, %v1418, 0
        %v1456 = vsel %vm898, %v1419, 0
        %v1459 = vsel %vm898, %v1420, 0
        %v1462 = vsel %vm898, %v1421, 0
        %v1465 = vsel %vm898, %v1422, 0
        %v1468 = vsel %vm898, %v1423, 0
        %v1471 = vsel %vm898, %v1424, 0
        %v1474 = vsel %vm923, %v1342, 0
        %1476 = vmatprep.subr.bf16.mxu0 0
        %1477 = vmatpush1.bf16.msra.mxu0 %v1474
        %1478 = vmatprep.subr.bf16.mxu0 0
        %1479 = vmatpush1.bf16.msra.mxu0 0
        %1480 = vmatprep.subr.bf16.mxu0 0
        %1481 = vmatpush1.bf16.msra.mxu0 0
        %1482 = vmatprep.subr.bf16.mxu0 0
        %1483 = vmatpush1.bf16.msra.mxu0 0
        %1484 = vmatprep.subr.bf16.mxu0 0
        %1485 = vmatpush1.bf16.msra.mxu0 0
        %1486 = vmatprep.subr.bf16.mxu0 0
        %1487 = vmatpush1.bf16.msra.mxu0 0
        %1488 = vmatprep.subr.bf16.mxu0 0
        %1489 = vmatpush1.bf16.msra.mxu0 0
        %1490 = vmatprep.subr.bf16.mxu0 0
        %1491 = vmatpush1.bf16.msra.mxu0 0
        %1492 = vmatprep.subr.bf16.mxu0 0
        %1493 = vmatpush1.bf16.msra.mxu0 0
        %1494 = vmatprep.subr.bf16.mxu0 0
        %1495 = vmatpush1.bf16.msra.mxu0 0
        %1496 = vmatprep.subr.bf16.mxu0 0
        %1497 = vmatpush1.bf16.msra.mxu0 0
        %1498 = vmatprep.subr.bf16.mxu0 0
        %1499 = vmatpush1.bf16.msra.mxu0 0
        %1500 = vmatprep.subr.bf16.mxu0 0
        %1501 = vmatpush1.bf16.msra.mxu0 0
        %1502 = vmatprep.subr.bf16.mxu0 0
        %1503 = vmatpush1.bf16.msra.mxu0 0
        %1504 = vmatprep.subr.bf16.mxu0 0
        %1505 = vmatpush1.bf16.msra.mxu0 0
        %1506 = vmatprep.subr.bf16.mxu0 0
        %1507 = vmatpush1.bf16.msra.mxu0 0
        %1508 = vmatprep.mubr.bf16.mxu0 0
        %1509 = vmatmul.mubr.bf16.gmra.mrb[0].mxu0 %v1426
        %v1510 = vpop.f32.mrb[0].mxu0
        %v1511 = vadd.f32 0.0, %v1510
        %v1512 = vpop.f32.mrb[0].mxu0
        %v1513 = vpop.f32.mrb[0].mxu0
        %v1514 = vadd.f32 0.0, %v1513
        %v1515 = vpop.f32.mrb[0].mxu0
        %1516 = vmatprep.mubr.bf16.mxu0 0
        %1517 = vmatmul.mubr.bf16.gmra.mrb[0].mxu0 %v1429
        %v1518 = vpop.f32.mrb[0].mxu0
        %v1519 = vadd.f32 0.0, %v1518
        %v1520 = vpop.f32.mrb[0].mxu0
        %v1521 = vpop.f32.mrb[0].mxu0
        %v1522 = vadd.f32 0.0, %v1521
        %v1523 = vpop.f32.mrb[0].mxu0
        %1524 = vmatprep.mubr.bf16.mxu0 0
        %1525 = vmatmul.mubr.bf16.gmra.mrb[0].mxu0 %v1432
        %v1526 = vpop.f32.mrb[0].mxu0
        %v1527 = vadd.f32 0.0, %v1526
        %v1528 = vpop.f32.mrb[0].mxu0
        %v1529 = vpop.f32.mrb[0].mxu0
        %v1530 = vadd.f32 0.0, %v1529
        %v1531 = vpop.f32.mrb[0].mxu0
        %1532 = vmatprep.mubr.bf16.mxu0 0
        %1533 = vmatmul.mubr.bf16.gmra.mrb[0].mxu0 %v1435
        %v1534 = vpop.f32.mrb[0].mxu0
        %v1535 = vadd.f32 0.0, %v1534
        %v1536 = vpop.f32.mrb[0].mxu0
        %v1537 = vpop.f32.mrb[0].mxu0
        %v1538 = vadd.f32 0.0, %v1537
        %v1539 = vpop.f32.mrb[0].mxu0
        %1540 = vmatprep.mubr.bf16.mxu0 0
        %1541 = vmatmul.mubr.bf16.gmra.mrb[0].mxu0 %v1438
        %v1542 = vpop.f32.mrb[0].mxu0
        %v1543 = vadd.f32 0.0, %v1542
        %v1544 = vpop.f32.mrb[0].mxu0
        %v1545 = vpop.f32.mrb[0].mxu0
        %v1546 = vadd.f32 0.0, %v1545
        %v1547 = vpop.f32.mrb[0].mxu0
        %1548 = vmatprep.mubr.bf16.mxu0 0
        %1549 = vmatmul.mubr.bf16.gmra.mrb[0].mxu0 %v1441
        %v1550 = vpop.f32.mrb[0].mxu0
        %v1551 = vadd.f32 0.0, %v1550
        %v1552 = vpop.f32.mrb[0].mxu0
        %v1553 = vpop.f32.mrb[0].mxu0
        %v1554 = vadd.f32 0.0, %v1553
        %v1555 = vpop.f32.mrb[0].mxu0
        %1556 = vmatprep.mubr.bf16.mxu0 0
        %1557 = vmatmul.mubr.bf16.gmra.mrb[0].mxu0 %v1444
        %v1558 = vpop.f32.mrb[0].mxu0
        %v1559 = vadd.f32 0.0, %v1558
        %v1560 = vpop.f32.mrb[0].mxu0
        %v1561 = vpop.f32.mrb[0].mxu0
        %v1562 = vadd.f32 0.0, %v1561
        %v1563 = vpop.f32.mrb[0].mxu0
        %1564 = vmatprep.mubr.bf16.mxu0 0
        %1565 = vmatmul.mubr.bf16.gmra.mrb[0].mxu0 %v1447
        %v1566 = vpop.f32.mrb[0].mxu0
        %v1567 = vadd.f32 0.0, %v1566
        %v1568 = vpop.f32.mrb[0].mxu0
        %v1569 = vpop.f32.mrb[0].mxu0
        %v1570 = vadd.f32 0.0, %v1569
        %v1571 = vpop.f32.mrb[0].mxu0
        %1572 = vmatprep.mubr.bf16.mxu0 0
        %1573 = vmatmul.mubr.bf16.gmra.mrb[0].mxu0 %v1450
        %v1574 = vpop.f32.mrb[0].mxu0
        %v1575 = vadd.f32 0.0, %v1574
        %v1576 = vpop.f32.mrb[0].mxu0
        %v1577 = vpop.f32.mrb[0].mxu0
        %v1578 = vadd.f32 0.0, %v1577
        %v1579 = vpop.f32.mrb[0].mxu0
        %1580 = vmatprep.mubr.bf16.mxu0 0
        %1581 = vmatmul.mubr.bf16.gmra.mrb[0].mxu0 %v1453
        %v1582 = vpop.f32.mrb[0].mxu0
        %v1583 = vadd.f32 0.0, %v1582
        %v1584 = vpop.f32.mrb[0].mxu0
        %v1585 = vpop.f32.mrb[0].mxu0
        %v1586 = vadd.f32 0.0, %v1585
        %v1587 = vpop.f32.mrb[0].mxu0
        %1588 = vmatprep.mubr.bf16.mxu0 0
        %1589 = vmatmul.mubr.bf16.gmra.mrb[0].mxu0 %v1456
        %v1590 = vpop.f32.mrb[0].mxu0
        %v1591 = vadd.f32 0.0, %v1590
        %v1592 = vpop.f32.mrb[0].mxu0
        %v1593 = vpop.f32.mrb[0].mxu0
        %v1594 = vadd.f32 0.0, %v1593
        %v1595 = vpop.f32.mrb[0].mxu0
        %1596 = vmatprep.mubr.bf16.mxu0 0
        %1597 = vmatmul.mubr.bf16.gmra.mrb[0].mxu0 %v1459
        %v1598 = vpop.f32.mrb[0].mxu0
        %v1599 = vadd.f32 0.0, %v1598
        %v1600 = vpop.f32.mrb[0].mxu0
        %v1601 = vpop.f32.mrb[0].mxu0
        %v1602 = vadd.f32 0.0, %v1601
        %v1603 = vpop.f32.mrb[0].mxu0
        %1604 = vmatprep.mubr.bf16.mxu0 0
        %1605 = vmatmul.mubr.bf16.gmra.mrb[0].mxu0 %v1462
        %v1606 = vpop.f32.mrb[0].mxu0
        %v1607 = vadd.f32 0.0, %v1606
        %v1608 = vpop.f32.mrb[0].mxu0
        %v1609 = vpop.f32.mrb[0].mxu0
        %v1610 = vadd.f32 0.0, %v1609
        %v1611 = vpop.f32.mrb[0].mxu0
        %1612 = vmatprep.mubr.bf16.mxu0 0
        %1613 = vmatmul.mubr.bf16.gmra.mrb[0].mxu0 %v1465
        %v1614 = vpop.f32.mrb[0].mxu0
        %v1615 = vadd.f32 0.0, %v1614
        %v1616 = vpop.f32.mrb[0].mxu0
        %v1617 = vpop.f32.mrb[0].mxu0
        %v1618 = vadd.f32 0.0, %v1617
        %v1619 = vpop.f32.mrb[0].mxu0
        %1620 = vmatprep.mubr.bf16.mxu0 0
        %1621 = vmatmul.mubr.bf16.gmra.mrb[0].mxu0 %v1468
        %v1622 = vpop.f32.mrb[0].mxu0
        %v1623 = vadd.f32 0.0, %v1622
        %v1624 = vpop.f32.mrb[0].mxu0
        %v1625 = vpop.f32.mrb[0].mxu0
        %v1626 = vadd.f32 0.0, %v1625
        %v1627 = vpop.f32.mrb[0].mxu0
        %1628 = vmatprep.mubr.bf16.mxu0 0
        %1629 = vmatmul.mubr.bf16.gmra.mrb[0].mxu0 %v1471
        %v1630 = vpop.f32.mrb[0].mxu0
        %v1631 = vadd.f32 0.0, %v1630
        %v1632 = vpop.f32.mrb[0].mxu0
        %v1633 = vpop.f32.mrb[0].mxu0
        %v1634 = vadd.f32 0.0, %v1633
        %v1635 = vpop.f32.mrb[0].mxu0
        %1636 = vdwg.mxu0
        %v1638 = vlaneseq
        %v1639 = vshrl.u32 %v1638, 7
        %v1640 = vsub.s32 0, %v1639
        %v1641 = vrot.slane %v1343, %v1640
        %v1643 = vmul.f32 %v1511, %v1641
        %v1644 = vmul.f32 %v1514, %v1641
        %v1645 = vmul.f32 %v1519, %v1641
        %v1646 = vmul.f32 %v1522, %v1641
        %v1647 = vmul.f32 %v1527, %v1641
        %v1648 = vmul.f32 %v1530, %v1641
        %v1649 = vmul.f32 %v1535, %v1641
        %v1650 = vmul.f32 %v1538, %v1641
        %v1651 = vmul.f32 %v1543, %v1641
        %v1652 = vmul.f32 %v1546, %v1641
        %v1653 = vmul.f32 %v1551, %v1641
        %v1654 = vmul.f32 %v1554, %v1641
        %v1655 = vmul.f32 %v1559, %v1641
        %v1656 = vmul.f32 %v1562, %v1641
        %v1657 = vmul.f32 %v1567, %v1641
        %v1658 = vmul.f32 %v1570, %v1641
        %v1659 = vmul.f32 %v1575, %v1641
        %v1660 = vmul.f32 %v1578, %v1641
        %v1661 = vmul.f32 %v1583, %v1641
        %v1662 = vmul.f32 %v1586, %v1641
        %v1663 = vmul.f32 %v1591, %v1641
        %v1664 = vmul.f32 %v1594, %v1641
        %v1665 = vmul.f32 %v1599, %v1641
        %v1666 = vmul.f32 %v1602, %v1641
        %v1667 = vmul.f32 %v1607, %v1641
        %v1668 = vmul.f32 %v1610, %v1641
        %v1669 = vmul.f32 %v1615, %v1641
        %v1670 = vmul.f32 %v1618, %v1641
        %v1671 = vmul.f32 %v1623, %v1641
        %v1672 = vmul.f32 %v1626, %v1641
        %v1673 = vmul.f32 %v1631, %v1641
        %v1674 = vmul.f32 %v1634, %v1641
        %v1676 = vlaneseq
        %v1677 = vshrl.u32 %v1676, 7
        %v1678 = vsub.s32 0, %v1677
        %v1679 = vrot.slane %v1344, %v1678
        %v1681 = vadd.f32 %v1643, %v1679
        %v1682 = vadd.f32 %v1644, %v1679
        %v1683 = vadd.f32 %v1645, %v1679
        %v1684 = vadd.f32 %v1646, %v1679
        %v1685 = vadd.f32 %v1647, %v1679
        %v1686 = vadd.f32 %v1648, %v1679
        %v1687 = vadd.f32 %v1649, %v1679
        %v1688 = vadd.f32 %v1650, %v1679
        %v1689 = vadd.f32 %v1651, %v1679
        %v1690 = vadd.f32 %v1652, %v1679
        %v1691 = vadd.f32 %v1653, %v1679
        %v1692 = vadd.f32 %v1654, %v1679
        %v1693 = vadd.f32 %v1655, %v1679
        %v1694 = vadd.f32 %v1656, %v1679
        %v1695 = vadd.f32 %v1657, %v1679
        %v1696 = vadd.f32 %v1658, %v1679
        %v1697 = vadd.f32 %v1659, %v1679
        %v1698 = vadd.f32 %v1660, %v1679
        %v1699 = vadd.f32 %v1661, %v1679
        %v1700 = vadd.f32 %v1662, %v1679
        %v1701 = vadd.f32 %v1663, %v1679
        %v1702 = vadd.f32 %v1664, %v1679
        %v1703 = vadd.f32 %v1665, %v1679
        %v1704 = vadd.f32 %v1666, %v1679
        %v1705 = vadd.f32 %v1667, %v1679
        %v1706 = vadd.f32 %v1668, %v1679
        %v1707 = vadd.f32 %v1669, %v1679
        %v1708 = vadd.f32 %v1670, %v1679
        %v1709 = vadd.f32 %v1671, %v1679
        %v1710 = vadd.f32 %v1672, %v1679
        %v1711 = vadd.f32 %v1673, %v1679
        %v1712 = vadd.f32 %v1674, %v1679
        %v1713 = vmax.f32 %v1681, 0.0
        %v1714 = vmax.f32 %v1682, 0.0
        %v1715 = vmax.f32 %v1683, 0.0
        %v1716 = vmax.f32 %v1684, 0.0
        %v1717 = vmax.f32 %v1685, 0.0
        %v1718 = vmax.f32 %v1686, 0.0
        %v1719 = vmax.f32 %v1687, 0.0
        %v1720 = vmax.f32 %v1688, 0.0
        %v1721 = vmax.f32 %v1689, 0.0
        %v1722 = vmax.f32 %v1690, 0.0
        %v1723 = vmax.f32 %v1691, 0.0
        %v1724 = vmax.f32 %v1692, 0.0
        %v1725 = vmax.f32 %v1693, 0.0
        %v1726 = vmax.f32 %v1694, 0.0
        %v1727 = vmax.f32 %v1695, 0.0
        %v1728 = vmax.f32 %v1696, 0.0
        %v1729 = vmax.f32 %v1697, 0.0
        %v1730 = vmax.f32 %v1698, 0.0
        %v1731 = vmax.f32 %v1699, 0.0
        %v1732 = vmax.f32 %v1700, 0.0
        %v1733 = vmax.f32 %v1701, 0.0
        %v1734 = vmax.f32 %v1702, 0.0
        %v1735 = vmax.f32 %v1703, 0.0
        %v1736 = vmax.f32 %v1704, 0.0
        %v1737 = vmax.f32 %v1705, 0.0
        %v1738 = vmax.f32 %v1706, 0.0
        %v1739 = vmax.f32 %v1707, 0.0
        %v1740 = vmax.f32 %v1708, 0.0
        %v1741 = vmax.f32 %v1709, 0.0
        %v1742 = vmax.f32 %v1710, 0.0
        %v1743 = vmax.f32 %v1711, 0.0
        %v1744 = vmax.f32 %v1712, 0.0
        %v1745 = vpack.c.bf16 %v1714, %v1713
        %v1746 = vpack.c.bf16 %v1716, %v1715
        %v1747 = vpack.c.bf16 %v1718, %v1717
        %v1748 = vpack.c.bf16 %v1720, %v1719
        %v1749 = vpack.c.bf16 %v1722, %v1721
        %v1750 = vpack.c.bf16 %v1724, %v1723
        %v1751 = vpack.c.bf16 %v1726, %v1725
        %v1752 = vpack.c.bf16 %v1728, %v1727
        %v1753 = vpack.c.bf16 %v1730, %v1729
        %v1754 = vpack.c.bf16 %v1732, %v1731
        %v1755 = vpack.c.bf16 %v1734, %v1733
        %v1756 = vpack.c.bf16 %v1736, %v1735
        %v1757 = vpack.c.bf16 %v1738, %v1737
        %v1758 = vpack.c.bf16 %v1740, %v1739
        %v1759 = vpack.c.bf16 %v1742, %v1741
        %v1760 = vpack.c.bf16 %v1744, %v1743
        %v1761 = vld [vmem:[%s11] sm:$0xf]
        %v1762 = vld [vmem:[%s12] sm:$0x1]
        %v1763 = vld [vmem:[%s13] sm:$0x1]
        %v1765 = vsel %vm898, %v1745, 0
        %v1768 = vsel %vm898, %v1746, 0
        %v1771 = vsel %vm898, %v1747, 0
        %v1774 = vsel %vm898, %v1748, 0
        %v1777 = vsel %vm898, %v1749, 0
        %v1780 = vsel %vm898, %v1750, 0
        %v1783 = vsel %vm898, %v1751, 0
        %v1786 = vsel %vm898, %v1752, 0
        %v1789 = vsel %vm898, %v1753, 0
        %v1792 = vsel %vm898, %v1754, 0
        %v1795 = vsel %vm898, %v1755, 0
        %v1798 = vsel %vm898, %v1756, 0
        %v1801 = vsel %vm898, %v1757, 0
        %v1804 = vsel %vm898, %v1758, 0
        %v1807 = vsel %vm898, %v1759, 0
        %v1810 = vsel %vm898, %v1760, 0
        %v1813 = vsel %vm923, %v1761, 0
        %1815 = vmatprep.subr.bf16.mxu0 0
        %1816 = vmatpush1.bf16.msra.mxu0 %v1813
        %1817 = vmatprep.subr.bf16.mxu0 0
        %1818 = vmatpush1.bf16.msra.mxu0 0
        %1819 = vmatprep.subr.bf16.mxu0 0
        %1820 = vmatpush1.bf16.msra.mxu0 0
        %1821 = vmatprep.subr.bf16.mxu0 0
        %1822 = vmatpush1.bf16.msra.mxu0 0
        %1823 = vmatprep.subr.bf16.mxu0 0
        %1824 = vmatpush1.bf16.msra.mxu0 0
        %1825 = vmatprep.subr.bf16.mxu0 0
        %1826 = vmatpush1.bf16.msra.mxu0 0
        %1827 = vmatprep.subr.bf16.mxu0 0
        %1828 = vmatpush1.bf16.msra.mxu0 0
        %1829 = vmatprep.subr.bf16.mxu0 0
        %1830 = vmatpush1.bf16.msra.mxu0 0
        %1831 = vmatprep.subr.bf16.mxu0 0
        %1832 = vmatpush1.bf16.msra.mxu0 0
        %1833 = vmatprep.subr.bf16.mxu0 0
        %1834 = vmatpush1.bf16.msra.mxu0 0
        %1835 = vmatprep.subr.bf16.mxu0 0
        %1836 = vmatpush1.bf16.msra.mxu0 0
        %1837 = vmatprep.subr.bf16.mxu0 0
        %1838 = vmatpush1.bf16.msra.mxu0 0
        %1839 = vmatprep.subr.bf16.mxu0 0
        %1840 = vmatpush1.bf16.msra.mxu0 0
        %1841 = vmatprep.subr.bf16.mxu0 0
        %1842 = vmatpush1.bf16.msra.mxu0 0
        %1843 = vmatprep.subr.bf16.mxu0 0
        %1844 = vmatpush1.bf16.msra.mxu0 0
        %1845 = vmatprep.subr.bf16.mxu0 0
        %1846 = vmatpush1.bf16.msra.mxu0 0
        %1847 = vmatprep.mubr.bf16.mxu0 0
        %1848 = vmatmul.mubr.bf16.gmra.mrb[0].mxu0 %v1765
        %v1849 = vpop.f32.mrb[0].mxu0
        %v1850 = vadd.f32 0.0, %v1849
        %v1851 = vpop.f32.mrb[0].mxu0
        %v1852 = vpop.f32.mrb[0].mxu0
        %v1853 = vadd.f32 0.0, %v1852
        %v1854 = vpop.f32.mrb[0].mxu0
        %1855 = vmatprep.mubr.bf16.mxu0 0
        %1856 = vmatmul.mubr.bf16.gmra.mrb[0].mxu0 %v1768
        %v1857 = vpop.f32.mrb[0].mxu0
        %v1858 = vadd.f32 0.0, %v1857
        %v1859 = vpop.f32.mrb[0].mxu0
        %v1860 = vpop.f32.mrb[0].mxu0
        %v1861 = vadd.f32 0.0, %v1860
        %v1862 = vpop.f32.mrb[0].mxu0
        %1863 = vmatprep.mubr.bf16.mxu0 0
        %1864 = vmatmul.mubr.bf16.gmra.mrb[0].mxu0 %v1771
        %v1865 = vpop.f32.mrb[0].mxu0
        %v1866 = vadd.f32 0.0, %v1865
        %v1867 = vpop.f32.mrb[0].mxu0
        %v1868 = vpop.f32.mrb[0].mxu0
        %v1869 = vadd.f32 0.0, %v1868
        %v1870 = vpop.f32.mrb[0].mxu0
        %1871 = vmatprep.mubr.bf16.mxu0 0
        %1872 = vmatmul.mubr.bf16.gmra.mrb[0].mxu0 %v1774
        %v1873 = vpop.f32.mrb[0].mxu0
        %v1874 = vadd.f32 0.0, %v1873
        %v1875 = vpop.f32.mrb[0].mxu0
        %v1876 = vpop.f32.mrb[0].mxu0
        %v1877 = vadd.f32 0.0, %v1876
        %v1878 = vpop.f32.mrb[0].mxu0
        %1879 = vmatprep.mubr.bf16.mxu0 0
        %1880 = vmatmul.mubr.bf16.gmra.mrb[0].mxu0 %v1777
        %v1881 = vpop.f32.mrb[0].mxu0
        %v1882 = vadd.f32 0.0, %v1881
        %v1883 = vpop.f32.mrb[0].mxu0
        %v1884 = vpop.f32.mrb[0].mxu0
        %v1885 = vadd.f32 0.0, %v1884
        %v1886 = vpop.f32.mrb[0].mxu0
        %1887 = vmatprep.mubr.bf16.mxu0 0
        %1888 = vmatmul.mubr.bf16.gmra.mrb[0].mxu0 %v1780
        %v1889 = vpop.f32.mrb[0].mxu0
        %v1890 = vadd.f32 0.0, %v1889
        %v1891 = vpop.f32.mrb[0].mxu0
        %v1892 = vpop.f32.mrb[0].mxu0
        %v1893 = vadd.f32 0.0, %v1892
        %v1894 = vpop.f32.mrb[0].mxu0
        %1895 = vmatprep.mubr.bf16.mxu0 0
        %1896 = vmatmul.mubr.bf16.gmra.mrb[0].mxu0 %v1783
        %v1897 = vpop.f32.mrb[0].mxu0
        %v1898 = vadd.f32 0.0, %v1897
        %v1899 = vpop.f32.mrb[0].mxu0
        %v1900 = vpop.f32.mrb[0].mxu0
        %v1901 = vadd.f32 0.0, %v1900
        %v1902 = vpop.f32.mrb[0].mxu0
        %1903 = vmatprep.mubr.bf16.mxu0 0
        %1904 = vmatmul.mubr.bf16.gmra.mrb[0].mxu0 %v1786
        %v1905 = vpop.f32.mrb[0].mxu0
        %v1906 = vadd.f32 0.0, %v1905
        %v1907 = vpop.f32.mrb[0].mxu0
        %v1908 = vpop.f32.mrb[0].mxu0
        %v1909 = vadd.f32 0.0, %v1908
        %v1910 = vpop.f32.mrb[0].mxu0
        %1911 = vmatprep.mubr.bf16.mxu0 0
        %1912 = vmatmul.mubr.bf16.gmra.mrb[0].mxu0 %v1789
        %v1913 = vpop.f32.mrb[0].mxu0
        %v1914 = vadd.f32 0.0, %v1913
        %v1915 = vpop.f32.mrb[0].mxu0
        %v1916 = vpop.f32.mrb[0].mxu0
        %v1917 = vadd.f32 0.0, %v1916
        %v1918 = vpop.f32.mrb[0].mxu0
        %1919 = vmatprep.mubr.bf16.mxu0 0
        %1920 = vmatmul.mubr.bf16.gmra.mrb[0].mxu0 %v1792
        %v1921 = vpop.f32.mrb[0].mxu0
        %v1922 = vadd.f32 0.0, %v1921
        %v1923 = vpop.f32.mrb[0].mxu0
        %v1924 = vpop.f32.mrb[0].mxu0
        %v1925 = vadd.f32 0.0, %v1924
        %v1926 = vpop.f32.mrb[0].mxu0
        %1927 = vmatprep.mubr.bf16.mxu0 0
        %1928 = vmatmul.mubr.bf16.gmra.mrb[0].mxu0 %v1795
        %v1929 = vpop.f32.mrb[0].mxu0
        %v1930 = vadd.f32 0.0, %v1929
        %v1931 = vpop.f32.mrb[0].mxu0
        %v1932 = vpop.f32.mrb[0].mxu0
        %v1933 = vadd.f32 0.0, %v1932
        %v1934 = vpop.f32.mrb[0].mxu0
        %1935 = vmatprep.mubr.bf16.mxu0 0
        %1936 = vmatmul.mubr.bf16.gmra.mrb[0].mxu0 %v1798
        %v1937 = vpop.f32.mrb[0].mxu0
        %v1938 = vadd.f32 0.0, %v1937
        %v1939 = vpop.f32.mrb[0].mxu0
        %v1940 = vpop.f32.mrb[0].mxu0
        %v1941 = vadd.f32 0.0, %v1940
        %v1942 = vpop.f32.mrb[0].mxu0
        %1943 = vmatprep.mubr.bf16.mxu0 0
        %1944 = vmatmul.mubr.bf16.gmra.mrb[0].mxu0 %v1801
        %v1945 = vpop.f32.mrb[0].mxu0
        %v1946 = vadd.f32 0.0, %v1945
        %v1947 = vpop.f32.mrb[0].mxu0
        %v1948 = vpop.f32.mrb[0].mxu0
        %v1949 = vadd.f32 0.0, %v1948
        %v1950 = vpop.f32.mrb[0].mxu0
        %1951 = vmatprep.mubr.bf16.mxu0 0
        %1952 = vmatmul.mubr.bf16.gmra.mrb[0].mxu0 %v1804
        %v1953 = vpop.f32.mrb[0].mxu0
        %v1954 = vadd.f32 0.0, %v1953
        %v1955 = vpop.f32.mrb[0].mxu0
        %v1956 = vpop.f32.mrb[0].mxu0
        %v1957 = vadd.f32 0.0, %v1956
        %v1958 = vpop.f32.mrb[0].mxu0
        %1959 = vmatprep.mubr.bf16.mxu0 0
        %1960 = vmatmul.mubr.bf16.gmra.mrb[0].mxu0 %v1807
        %v1961 = vpop.f32.mrb[0].mxu0
        %v1962 = vadd.f32 0.0, %v1961
        %v1963 = vpop.f32.mrb[0].mxu0
        %v1964 = vpop.f32.mrb[0].mxu0
        %v1965 = vadd.f32 0.0, %v1964
        %v1966 = vpop.f32.mrb[0].mxu0
        %1967 = vmatprep.mubr.bf16.mxu0 0
        %1968 = vmatmul.mubr.bf16.gmra.mrb[0].mxu0 %v1810
        %v1969 = vpop.f32.mrb[0].mxu0
        %v1970 = vadd.f32 0.0, %v1969
        %v1971 = vpop.f32.mrb[0].mxu0
        %v1972 = vpop.f32.mrb[0].mxu0
        %v1973 = vadd.f32 0.0, %v1972
        %v1974 = vpop.f32.mrb[0].mxu0
        %1975 = vdwg.mxu0
        %v1977 = vlaneseq
        %v1978 = vshrl.u32 %v1977, 7
        %v1979 = vsub.s32 0, %v1978
        %v1980 = vrot.slane %v1762, %v1979
        %v1982 = vmul.f32 %v1850, %v1980
        %v1983 = vmul.f32 %v1853, %v1980
        %v1984 = vmul.f32 %v1858, %v1980
        %v1985 = vmul.f32 %v1861, %v1980
        %v1986 = vmul.f32 %v1866, %v1980
        %v1987 = vmul.f32 %v1869, %v1980
        %v1988 = vmul.f32 %v1874, %v1980
        %v1989 = vmul.f32 %v1877, %v1980
        %v1990 = vmul.f32 %v1882, %v1980
        %v1991 = vmul.f32 %v1885, %v1980
        %v1992 = vmul.f32 %v1890, %v1980
        %v1993 = vmul.f32 %v1893, %v1980
        %v1994 = vmul.f32 %v1898, %v1980
        %v1995 = vmul.f32 %v1901, %v1980
        %v1996 = vmul.f32 %v1906, %v1980
        %v1997 = vmul.f32 %v1909, %v1980
        %v1998 = vmul.f32 %v1914, %v1980
        %v1999 = vmul.f32 %v1917, %v1980
        %v2000 = vmul.f32 %v1922, %v1980
        %v2001 = vmul.f32 %v1925, %v1980
        %v2002 = vmul.f32 %v1930, %v1980
        %v2003 = vmul.f32 %v1933, %v1980
        %v2004 = vmul.f32 %v1938, %v1980
        %v2005 = vmul.f32 %v1941, %v1980
        %v2006 = vmul.f32 %v1946, %v1980
        %v2007 = vmul.f32 %v1949, %v1980
        %v2008 = vmul.f32 %v1954, %v1980
        %v2009 = vmul.f32 %v1957, %v1980
        %v2010 = vmul.f32 %v1962, %v1980
        %v2011 = vmul.f32 %v1965, %v1980
        %v2012 = vmul.f32 %v1970, %v1980
        %v2013 = vmul.f32 %v1973, %v1980
        %v2015 = vlaneseq
        %v2016 = vshrl.u32 %v2015, 7
        %v2017 = vsub.s32 0, %v2016
        %v2018 = vrot.slane %v1763, %v2017
        %v2020 = vadd.f32 %v1982, %v2018
        %v2021 = vadd.f32 %v1983, %v2018
        %v2022 = vadd.f32 %v1984, %v2018
        %v2023 = vadd.f32 %v1985, %v2018
        %v2024 = vadd.f32 %v1986, %v2018
        %v2025 = vadd.f32 %v1987, %v2018
        %v2026 = vadd.f32 %v1988, %v2018
        %v2027 = vadd.f32 %v1989, %v2018
        %v2028 = vadd.f32 %v1990, %v2018
        %v2029 = vadd.f32 %v1991, %v2018
        %v2030 = vadd.f32 %v1992, %v2018
        %v2031 = vadd.f32 %v1993, %v2018
        %v2032 = vadd.f32 %v1994, %v2018
        %v2033 = vadd.f32 %v1995, %v2018
        %v2034 = vadd.f32 %v1996, %v2018
        %v2035 = vadd.f32 %v1997, %v2018
        %v2036 = vadd.f32 %v1998, %v2018
        %v2037 = vadd.f32 %v1999, %v2018
        %v2038 = vadd.f32 %v2000, %v2018
        %v2039 = vadd.f32 %v2001, %v2018
        %v2040 = vadd.f32 %v2002, %v2018
        %v2041 = vadd.f32 %v2003, %v2018
        %v2042 = vadd.f32 %v2004, %v2018
        %v2043 = vadd.f32 %v2005, %v2018
        %v2044 = vadd.f32 %v2006, %v2018
        %v2045 = vadd.f32 %v2007, %v2018
        %v2046 = vadd.f32 %v2008, %v2018
        %v2047 = vadd.f32 %v2009, %v2018
        %v2048 = vadd.f32 %v2010, %v2018
        %v2049 = vadd.f32 %v2011, %v2018
        %v2050 = vadd.f32 %v2012, %v2018
        %v2051 = vadd.f32 %v2013, %v2018
        %v2052 = vmax.f32 %v2020, 0.0
        %v2053 = vmax.f32 %v2021, 0.0
        %v2054 = vmax.f32 %v2022, 0.0
        %v2055 = vmax.f32 %v2023, 0.0
        %v2056 = vmax.f32 %v2024, 0.0
        %v2057 = vmax.f32 %v2025, 0.0
        %v2058 = vmax.f32 %v2026, 0.0
        %v2059 = vmax.f32 %v2027, 0.0
        %v2060 = vmax.f32 %v2028, 0.0
        %v2061 = vmax.f32 %v2029, 0.0
        %v2062 = vmax.f32 %v2030, 0.0
        %v2063 = vmax.f32 %v2031, 0.0
        %v2064 = vmax.f32 %v2032, 0.0
        %v2065 = vmax.f32 %v2033, 0.0
        %v2066 = vmax.f32 %v2034, 0.0
        %v2067 = vmax.f32 %v2035, 0.0
        %v2068 = vmax.f32 %v2036, 0.0
        %v2069 = vmax.f32 %v2037, 0.0
        %v2070 = vmax.f32 %v2038, 0.0
        %v2071 = vmax.f32 %v2039, 0.0
        %v2072 = vmax.f32 %v2040, 0.0
        %v2073 = vmax.f32 %v2041, 0.0
        %v2074 = vmax.f32 %v2042, 0.0
        %v2075 = vmax.f32 %v2043, 0.0
        %v2076 = vmax.f32 %v2044, 0.0
        %v2077 = vmax.f32 %v2045, 0.0
        %v2078 = vmax.f32 %v2046, 0.0
        %v2079 = vmax.f32 %v2047, 0.0
        %v2080 = vmax.f32 %v2048, 0.0
        %v2081 = vmax.f32 %v2049, 0.0
        %v2082 = vmax.f32 %v2050, 0.0
        %v2083 = vmax.f32 %v2051, 0.0
        %v2084 = vpack.c.bf16 %v2053, %v2052
        %v2085 = vpack.c.bf16 %v2055, %v2054
        %v2086 = vpack.c.bf16 %v2057, %v2056
        %v2087 = vpack.c.bf16 %v2059, %v2058
        %v2088 = vpack.c.bf16 %v2061, %v2060
        %v2089 = vpack.c.bf16 %v2063, %v2062
        %v2090 = vpack.c.bf16 %v2065, %v2064
        %v2091 = vpack.c.bf16 %v2067, %v2066
        %v2092 = vpack.c.bf16 %v2069, %v2068
        %v2093 = vpack.c.bf16 %v2071, %v2070
        %v2094 = vpack.c.bf16 %v2073, %v2072
        %v2095 = vpack.c.bf16 %v2075, %v2074
        %v2096 = vpack.c.bf16 %v2077, %v2076
        %v2097 = vpack.c.bf16 %v2079, %v2078
        %v2098 = vpack.c.bf16 %v2081, %v2080
        %v2099 = vpack.c.bf16 %v2083, %v2082
        %v2100 = vld [vmem:[%s14] sm:$0xf]
        %v2101 = vld [vmem:[%s14 + $0x4] sm:$0xf]
        %v2102 = vld [vmem:[%s15] sm:$0x1]
        %v2103 = vld [vmem:[%s16] sm:$0x1]
        %v2106 = vunpack.c.l.b16 %v2100
        %v2107 = vunpack.c.l.b16 %v2101
        %v2108 = vpack.c.b16 %v2107, %v2106
        %v2111 = vsel %vm1279, %v2084, 0
        %v2114 = vsel %vm1279, %v2085, 0
        %v2117 = vsel %vm1279, %v2086, 0
        %v2120 = vsel %vm1279, %v2087, 0
        %v2123 = vsel %vm1279, %v2088, 0
        %v2126 = vsel %vm1279, %v2089, 0
        %v2129 = vsel %vm1279, %v2090, 0
        %v2132 = vsel %vm1279, %v2091, 0
        %v2135 = vsel %vm1279, %v2092, 0
        %v2138 = vsel %vm1279, %v2093, 0
        %v2141 = vsel %vm1279, %v2094, 0
        %v2144 = vsel %vm1279, %v2095, 0
        %v2147 = vsel %vm1279, %v2096, 0
        %v2150 = vsel %vm1279, %v2097, 0
        %v2153 = vsel %vm1279, %v2098, 0
        %v2156 = vsel %vm1279, %v2099, 0
        %2158 = vmatprep.subr.bf16.mxu0 0
        %2159 = vmatpush1.bf16.msra.mxu0 %v2108
        %2160 = vmatprep.subr.bf16.mxu0 0
        %2161 = vmatpush1.bf16.msra.mxu0 0
        %2162 = vmatprep.subr.bf16.mxu0 0
        %2163 = vmatpush1.bf16.msra.mxu0 0
        %2164 = vmatprep.subr.bf16.mxu0 0
        %2165 = vmatpush1.bf16.msra.mxu0 0
        %2166 = vmatprep.subr.bf16.mxu0 0
        %2167 = vmatpush1.bf16.msra.mxu0 0
        %2168 = vmatprep.subr.bf16.mxu0 0
        %2169 = vmatpush1.bf16.msra.mxu0 0
        %2170 = vmatprep.subr.bf16.mxu0 0
        %2171 = vmatpush1.bf16.msra.mxu0 0
        %2172 = vmatprep.subr.bf16.mxu0 0
        %2173 = vmatpush1.bf16.msra.mxu0 0
        %2174 = vmatprep.subr.bf16.mxu0 0
        %2175 = vmatpush1.bf16.msra.mxu0 0
        %2176 = vmatprep.subr.bf16.mxu0 0
        %2177 = vmatpush1.bf16.msra.mxu0 0
        %2178 = vmatprep.subr.bf16.mxu0 0
        %2179 = vmatpush1.bf16.msra.mxu0 0
        %2180 = vmatprep.subr.bf16.mxu0 0
        %2181 = vmatpush1.bf16.msra.mxu0 0
        %2182 = vmatprep.subr.bf16.mxu0 0
        %2183 = vmatpush1.bf16.msra.mxu0 0
        %2184 = vmatprep.subr.bf16.mxu0 0
        %2185 = vmatpush1.bf16.msra.mxu0 0
        %2186 = vmatprep.subr.bf16.mxu0 0
        %2187 = vmatpush1.bf16.msra.mxu0 0
        %2188 = vmatprep.subr.bf16.mxu0 0
        %2189 = vmatpush1.bf16.msra.mxu0 0
        %2190 = vmatprep.mubr.bf16.mxu0 0
        %2191 = vmatmul.mubr.bf16.gmra.mrb[0].mxu0 %v2111
        %v2192 = vpop.f32.mrb[0].mxu0
        %v2193 = vadd.f32 0.0, %v2192
        %v2194 = vpop.f32.mrb[0].mxu0
        %v2195 = vpop.f32.mrb[0].mxu0
        %v2196 = vadd.f32 0.0, %v2195
        %v2197 = vpop.f32.mrb[0].mxu0
        %2198 = vmatprep.mubr.bf16.mxu0 0
        %2199 = vmatmul.mubr.bf16.gmra.mrb[0].mxu0 %v2114
        %v2200 = vpop.f32.mrb[0].mxu0
        %v2201 = vadd.f32 0.0, %v2200
        %v2202 = vpop.f32.mrb[0].mxu0
        %v2203 = vpop.f32.mrb[0].mxu0
        %v2204 = vadd.f32 0.0, %v2203
        %v2205 = vpop.f32.mrb[0].mxu0
        %2206 = vmatprep.mubr.bf16.mxu0 0
        %2207 = vmatmul.mubr.bf16.gmra.mrb[0].mxu0 %v2117
        %v2208 = vpop.f32.mrb[0].mxu0
        %v2209 = vadd.f32 0.0, %v2208
        %v2210 = vpop.f32.mrb[0].mxu0
        %v2211 = vpop.f32.mrb[0].mxu0
        %v2212 = vadd.f32 0.0, %v2211
        %v2213 = vpop.f32.mrb[0].mxu0
        %2214 = vmatprep.mubr.bf16.mxu0 0
        %2215 = vmatmul.mubr.bf16.gmra.mrb[0].mxu0 %v2120
        %v2216 = vpop.f32.mrb[0].mxu0
        %v2217 = vadd.f32 0.0, %v2216
        %v2218 = vpop.f32.mrb[0].mxu0
        %v2219 = vpop.f32.mrb[0].mxu0
        %v2220 = vadd.f32 0.0, %v2219
        %v2221 = vpop.f32.mrb[0].mxu0
        %2222 = vmatprep.mubr.bf16.mxu0 0
        %2223 = vmatmul.mubr.bf16.gmra.mrb[0].mxu0 %v2123
        %v2224 = vpop.f32.mrb[0].mxu0
        %v2225 = vadd.f32 0.0, %v2224
        %v2226 = vpop.f32.mrb[0].mxu0
        %v2227 = vpop.f32.mrb[0].mxu0
        %v2228 = vadd.f32 0.0, %v2227
        %v2229 = vpop.f32.mrb[0].mxu0
        %2230 = vmatprep.mubr.bf16.mxu0 0
        %2231 = vmatmul.mubr.bf16.gmra.mrb[0].mxu0 %v2126
        %v2232 = vpop.f32.mrb[0].mxu0
        %v2233 = vadd.f32 0.0, %v2232
        %v2234 = vpop.f32.mrb[0].mxu0
        %v2235 = vpop.f32.mrb[0].mxu0
        %v2236 = vadd.f32 0.0, %v2235
        %v2237 = vpop.f32.mrb[0].mxu0
        %2238 = vmatprep.mubr.bf16.mxu0 0
        %2239 = vmatmul.mubr.bf16.gmra.mrb[0].mxu0 %v2129
        %v2240 = vpop.f32.mrb[0].mxu0
        %v2241 = vadd.f32 0.0, %v2240
        %v2242 = vpop.f32.mrb[0].mxu0
        %v2243 = vpop.f32.mrb[0].mxu0
        %v2244 = vadd.f32 0.0, %v2243
        %v2245 = vpop.f32.mrb[0].mxu0
        %2246 = vmatprep.mubr.bf16.mxu0 0
        %2247 = vmatmul.mubr.bf16.gmra.mrb[0].mxu0 %v2132
        %v2248 = vpop.f32.mrb[0].mxu0
        %v2249 = vadd.f32 0.0, %v2248
        %v2250 = vpop.f32.mrb[0].mxu0
        %v2251 = vpop.f32.mrb[0].mxu0
        %v2252 = vadd.f32 0.0, %v2251
        %v2253 = vpop.f32.mrb[0].mxu0
        %2254 = vmatprep.mubr.bf16.mxu0 0
        %2255 = vmatmul.mubr.bf16.gmra.mrb[0].mxu0 %v2135
        %v2256 = vpop.f32.mrb[0].mxu0
        %v2257 = vadd.f32 0.0, %v2256
        %v2258 = vpop.f32.mrb[0].mxu0
        %v2259 = vpop.f32.mrb[0].mxu0
        %v2260 = vadd.f32 0.0, %v2259
        %v2261 = vpop.f32.mrb[0].mxu0
        %2262 = vmatprep.mubr.bf16.mxu0 0
        %2263 = vmatmul.mubr.bf16.gmra.mrb[0].mxu0 %v2138
        %v2264 = vpop.f32.mrb[0].mxu0
        %v2265 = vadd.f32 0.0, %v2264
        %v2266 = vpop.f32.mrb[0].mxu0
        %v2267 = vpop.f32.mrb[0].mxu0
        %v2268 = vadd.f32 0.0, %v2267
        %v2269 = vpop.f32.mrb[0].mxu0
        %2270 = vmatprep.mubr.bf16.mxu0 0
        %2271 = vmatmul.mubr.bf16.gmra.mrb[0].mxu0 %v2141
        %v2272 = vpop.f32.mrb[0].mxu0
        %v2273 = vadd.f32 0.0, %v2272
        %v2274 = vpop.f32.mrb[0].mxu0
        %v2275 = vpop.f32.mrb[0].mxu0
        %v2276 = vadd.f32 0.0, %v2275
        %v2277 = vpop.f32.mrb[0].mxu0
        %2278 = vmatprep.mubr.bf16.mxu0 0
        %2279 = vmatmul.mubr.bf16.gmra.mrb[0].mxu0 %v2144
        %v2280 = vpop.f32.mrb[0].mxu0
        %v2281 = vadd.f32 0.0, %v2280
        %v2282 = vpop.f32.mrb[0].mxu0
        %v2283 = vpop.f32.mrb[0].mxu0
        %v2284 = vadd.f32 0.0, %v2283
        %v2285 = vpop.f32.mrb[0].mxu0
        %2286 = vmatprep.mubr.bf16.mxu0 0
        %2287 = vmatmul.mubr.bf16.gmra.mrb[0].mxu0 %v2147
        %v2288 = vpop.f32.mrb[0].mxu0
        %v2289 = vadd.f32 0.0, %v2288
        %v2290 = vpop.f32.mrb[0].mxu0
        %v2291 = vpop.f32.mrb[0].mxu0
        %v2292 = vadd.f32 0.0, %v2291
        %v2293 = vpop.f32.mrb[0].mxu0
        %2294 = vmatprep.mubr.bf16.mxu0 0
        %2295 = vmatmul.mubr.bf16.gmra.mrb[0].mxu0 %v2150
        %v2296 = vpop.f32.mrb[0].mxu0
        %v2297 = vadd.f32 0.0, %v2296
        %v2298 = vpop.f32.mrb[0].mxu0
        %v2299 = vpop.f32.mrb[0].mxu0
        %v2300 = vadd.f32 0.0, %v2299
        %v2301 = vpop.f32.mrb[0].mxu0
        %2302 = vmatprep.mubr.bf16.mxu0 0
        %2303 = vmatmul.mubr.bf16.gmra.mrb[0].mxu0 %v2153
        %v2304 = vpop.f32.mrb[0].mxu0
        %v2305 = vadd.f32 0.0, %v2304
        %v2306 = vpop.f32.mrb[0].mxu0
        %v2307 = vpop.f32.mrb[0].mxu0
        %v2308 = vadd.f32 0.0, %v2307
        %v2309 = vpop.f32.mrb[0].mxu0
        %2310 = vmatprep.mubr.bf16.mxu0 0
        %2311 = vmatmul.mubr.bf16.gmra.mrb[0].mxu0 %v2156
        %v2312 = vpop.f32.mrb[0].mxu0
        %v2313 = vadd.f32 0.0, %v2312
        %v2314 = vpop.f32.mrb[0].mxu0
        %v2315 = vpop.f32.mrb[0].mxu0
        %v2316 = vadd.f32 0.0, %v2315
        %v2317 = vpop.f32.mrb[0].mxu0
        %2318 = vdwg.mxu0
        %v2320 = vlaneseq
        %v2321 = vshrl.u32 %v2320, 7
        %v2322 = vsub.s32 0, %v2321
        %v2323 = vrot.slane %v2102, %v2322
        %v2325 = vmul.f32 %v2193, %v2323
        %v2326 = vmul.f32 %v2196, %v2323
        %v2327 = vmul.f32 %v2201, %v2323
        %v2328 = vmul.f32 %v2204, %v2323
        %v2329 = vmul.f32 %v2209, %v2323
        %v2330 = vmul.f32 %v2212, %v2323
        %v2331 = vmul.f32 %v2217, %v2323
        %v2332 = vmul.f32 %v2220, %v2323
        %v2333 = vmul.f32 %v2225, %v2323
        %v2334 = vmul.f32 %v2228, %v2323
        %v2335 = vmul.f32 %v2233, %v2323
        %v2336 = vmul.f32 %v2236, %v2323
        %v2337 = vmul.f32 %v2241, %v2323
        %v2338 = vmul.f32 %v2244, %v2323
        %v2339 = vmul.f32 %v2249, %v2323
        %v2340 = vmul.f32 %v2252, %v2323
        %v2341 = vmul.f32 %v2257, %v2323
        %v2342 = vmul.f32 %v2260, %v2323
        %v2343 = vmul.f32 %v2265, %v2323
        %v2344 = vmul.f32 %v2268, %v2323
        %v2345 = vmul.f32 %v2273, %v2323
        %v2346 = vmul.f32 %v2276, %v2323
        %v2347 = vmul.f32 %v2281, %v2323
        %v2348 = vmul.f32 %v2284, %v2323
        %v2349 = vmul.f32 %v2289, %v2323
        %v2350 = vmul.f32 %v2292, %v2323
        %v2351 = vmul.f32 %v2297, %v2323
        %v2352 = vmul.f32 %v2300, %v2323
        %v2353 = vmul.f32 %v2305, %v2323
        %v2354 = vmul.f32 %v2308, %v2323
        %v2355 = vmul.f32 %v2313, %v2323
        %v2356 = vmul.f32 %v2316, %v2323
        %v2358 = vlaneseq
        %v2359 = vshrl.u32 %v2358, 7
        %v2360 = vsub.s32 0, %v2359
        %v2361 = vrot.slane %v2103, %v2360
        %v2363 = vadd.f32 %v2325, %v2361
        %v2364 = vadd.f32 %v2326, %v2361
        %v2365 = vadd.f32 %v2327, %v2361
        %v2366 = vadd.f32 %v2328, %v2361
        %v2367 = vadd.f32 %v2329, %v2361
        %v2368 = vadd.f32 %v2330, %v2361
        %v2369 = vadd.f32 %v2331, %v2361
        %v2370 = vadd.f32 %v2332, %v2361
        %v2371 = vadd.f32 %v2333, %v2361
        %v2372 = vadd.f32 %v2334, %v2361
        %v2373 = vadd.f32 %v2335, %v2361
        %v2374 = vadd.f32 %v2336, %v2361
        %v2375 = vadd.f32 %v2337, %v2361
        %v2376 = vadd.f32 %v2338, %v2361
        %v2377 = vadd.f32 %v2339, %v2361
        %v2378 = vadd.f32 %v2340, %v2361
        %v2379 = vadd.f32 %v2341, %v2361
        %v2380 = vadd.f32 %v2342, %v2361
        %v2381 = vadd.f32 %v2343, %v2361
        %v2382 = vadd.f32 %v2344, %v2361
        %v2383 = vadd.f32 %v2345, %v2361
        %v2384 = vadd.f32 %v2346, %v2361
        %v2385 = vadd.f32 %v2347, %v2361
        %v2386 = vadd.f32 %v2348, %v2361
        %v2387 = vadd.f32 %v2349, %v2361
        %v2388 = vadd.f32 %v2350, %v2361
        %v2389 = vadd.f32 %v2351, %v2361
        %v2390 = vadd.f32 %v2352, %v2361
        %v2391 = vadd.f32 %v2353, %v2361
        %v2392 = vadd.f32 %v2354, %v2361
        %v2393 = vadd.f32 %v2355, %v2361
        %v2394 = vadd.f32 %v2356, %v2361
        %v2395 = vmax.f32 %v2363, 0.0
        %v2396 = vmax.f32 %v2364, 0.0
        %v2397 = vmax.f32 %v2365, 0.0
        %v2398 = vmax.f32 %v2366, 0.0
        %v2399 = vmax.f32 %v2367, 0.0
        %v2400 = vmax.f32 %v2368, 0.0
        %v2401 = vmax.f32 %v2369, 0.0
        %v2402 = vmax.f32 %v2370, 0.0
        %v2403 = vmax.f32 %v2371, 0.0
        %v2404 = vmax.f32 %v2372, 0.0
        %v2405 = vmax.f32 %v2373, 0.0
        %v2406 = vmax.f32 %v2374, 0.0
        %v2407 = vmax.f32 %v2375, 0.0
        %v2408 = vmax.f32 %v2376, 0.0
        %v2409 = vmax.f32 %v2377, 0.0
        %v2410 = vmax.f32 %v2378, 0.0
        %v2411 = vmax.f32 %v2379, 0.0
        %v2412 = vmax.f32 %v2380, 0.0
        %v2413 = vmax.f32 %v2381, 0.0
        %v2414 = vmax.f32 %v2382, 0.0
        %v2415 = vmax.f32 %v2383, 0.0
        %v2416 = vmax.f32 %v2384, 0.0
        %v2417 = vmax.f32 %v2385, 0.0
        %v2418 = vmax.f32 %v2386, 0.0
        %v2419 = vmax.f32 %v2387, 0.0
        %v2420 = vmax.f32 %v2388, 0.0
        %v2421 = vmax.f32 %v2389, 0.0
        %v2422 = vmax.f32 %v2390, 0.0
        %v2423 = vmax.f32 %v2391, 0.0
        %v2424 = vmax.f32 %v2392, 0.0
        %v2425 = vmax.f32 %v2393, 0.0
        %v2426 = vmax.f32 %v2394, 0.0
        %vm2427 = vcmask 261120
        %v2428 = vsel %vm2427, %v2395, -inf
        %v2429 = vsel %vm2427, %v2397, -inf
        %v2430 = vsel %vm2427, %v2399, -inf
        %v2431 = vmax.f32 %v2428, %v2430
        %v2432 = vsel %vm2427, %v2401, -inf
        %v2433 = vmax.f32 %v2429, %v2432
        %v2434 = vsel %vm2427, %v2403, -inf
        %v2435 = vmax.f32 %v2431, %v2434
        %v2436 = vsel %vm2427, %v2405, -inf
        %v2437 = vmax.f32 %v2433, %v2436
        %v2438 = vsel %vm2427, %v2407, -inf
        %v2439 = vmax.f32 %v2435, %v2438
        %v2440 = vsel %vm2427, %v2409, -inf
        %v2441 = vmax.f32 %v2437, %v2440
        %v2442 = vsel %vm2427, %v2411, -inf
        %v2443 = vmax.f32 %v2439, %v2442
        %v2444 = vsel %vm2427, %v2413, -inf
        %v2445 = vmax.f32 %v2441, %v2444
        %v2446 = vsel %vm2427, %v2415, -inf
        %v2447 = vmax.f32 %v2443, %v2446
        %v2448 = vsel %vm2427, %v2417, -inf
        %v2449 = vmax.f32 %v2445, %v2448
        %v2450 = vsel %vm2427, %v2419, -inf
        %v2451 = vmax.f32 %v2447, %v2450
        %v2452 = vsel %vm2427, %v2421, -inf
        %v2453 = vmax.f32 %v2449, %v2452
        %v2454 = vsel %vm2427, %v2423, -inf
        %v2455 = vmax.f32 %v2451, %v2454
        %v2456 = vsel %vm2427, %v2425, -inf
        %v2457 = vmax.f32 %v2453, %v2456
        %v2458 = vmax.f32 %v2455, %v2457
        %v2459 = vsel %vm2427, %v2396, -inf
        %v2460 = vsel %vm2427, %v2398, -inf
        %v2461 = vsel %vm2427, %v2400, -inf
        %v2462 = vmax.f32 %v2459, %v2461
        %v2463 = vsel %vm2427, %v2402, -inf
        %v2464 = vmax.f32 %v2460, %v2463
        %v2465 = vsel %vm2427, %v2404, -inf
        %v2466 = vmax.f32 %v2462, %v2465
        %v2467 = vsel %vm2427, %v2406, -inf
        %v2468 = vmax.f32 %v2464, %v2467
        %v2469 = vsel %vm2427, %v2408, -inf
        %v2470 = vmax.f32 %v2466, %v2469
        %v2471 = vsel %vm2427, %v2410, -inf
        %v2472 = vmax.f32 %v2468, %v2471
        %v2473 = vsel %vm2427, %v2412, -inf
        %v2474 = vmax.f32 %v2470, %v2473
        %v2475 = vsel %vm2427, %v2414, -inf
        %v2476 = vmax.f32 %v2472, %v2475
        %v2477 = vsel %vm2427, %v2416, -inf
        %v2478 = vmax.f32 %v2474, %v2477
        %v2479 = vsel %vm2427, %v2418, -inf
        %v2480 = vmax.f32 %v2476, %v2479
        %v2481 = vsel %vm2427, %v2420, -inf
        %v2482 = vmax.f32 %v2478, %v2481
        %v2483 = vsel %vm2427, %v2422, -inf
        %v2484 = vmax.f32 %v2480, %v2483
        %v2485 = vsel %vm2427, %v2424, -inf
        %v2486 = vmax.f32 %v2482, %v2485
        %v2487 = vsel %vm2427, %v2426, -inf
        %v2488 = vmax.f32 %v2484, %v2487
        %v2489 = vmax.f32 %v2486, %v2488
        %2492 = vrot.lane.b32.xlu0 %v2458, 16
        %v2493 = vpop.permute.xlu0 %2492
        %2494 = vrot.lane.b32.xlu0 %v2489, 16
        %v2495 = vpop.permute.xlu0 %2494
        %v2498 = vsel %vm1279, %v1294, %v2493
        %v2499 = vsel %vm1279, %v1309, %v2495
        %vm2500 = vcmask 392192
        %v2501 = vsel %vm2500, %v2498, 0.0
        %v2502 = vsel %vm2500, %v2499, 0.0
        %2503 = vst [vmem:[%s834] sm:$0xff] %v2501
        %2504 = vst [vmem:[%s834 + $0x8] sm:$0xff] %v2502
        %s2505 = sand.u32 %s406, 1
        %s2506 = scalar_lea.sflag [#allocation5], %s2505
        %s2507 = sand.u32 %s406, 1
        %s2508 = smul.addr %s2507, 16
        %s2509 = scalar_lea.vmem [#allocation4], %s2508
        // Predicated region
        $region171: #{tpu_custom_call.1} parent=161 // pred_check
          %p2510 = pneg %p416
        $region172: #{tpu_custom_call.1} parent=161 // pred_check_branch
          %2512 = sbr.rel (%p2510) target = $region174
        $region173: #{tpu_custom_call.1} parent=161 // pred_region
          %s2513 = smul.u32 2, %s31
          %s2515 = ssub.s32 256, 256
          %2516 = vsyncadd %s2506, %s2515
          %s2517 = smul.addr %s2513, 128
          %s2518 = scalar_lea.hbm %s17, %s2517
          %s2519 = sshll.u32 %s2509, 4
          %s2520 = int_to_ptr.vmem [resolvable:$true] %s2519
          %2525 = dma.vmem_to_hbm [thread:$0]  %s2520, 256, %s2518, %s2506, 128, 128, 8
        $region174: #{tpu_custom_call.1} parent=161 // pred_fallthru
          _
      $region162: #{tpu_custom_call.1} parent=5 // pred_fallthru
        _
      %p2526 = scmp.le.s32.totalorder 2, %s26
      // Predicated region
      $region175: #{tpu_custom_call.1} parent=5 // pred_check
        %p2527 = pneg %p2526
      $region176: #{tpu_custom_call.1} parent=5 // pred_check_branch
        %2529 = sbr.rel (%p2527) target = $region178
      $region177: #{tpu_custom_call.1} parent=5 // pred_region
        %s2530 = ssub.s32 %s26, 2
        // Predicated region
        $region179: #{tpu_custom_call.1} parent=177 // pred_check
          %p2531 = pneg %p422
        $region180: #{tpu_custom_call.1} parent=177 // pred_check_branch
          %2533 = sbr.rel (%p2531) target = $region182
        $region181: #{tpu_custom_call.1} parent=177 // pred_region
          %s2534 = sand.u32 %s407, 1
          %s2535 = scalar_lea.sflag [#allocation5], %s2534
          %s2536 = sand.u32 %s407, 1
          %s2537 = smul.addr %s2536, 16
          %s2538 = scalar_lea.vmem [#allocation4], %s2537
          %2539 = dma.done %s2535, 256
        $region182: #{tpu_custom_call.1} parent=177 // pred_fallthru
          _
      $region178: #{tpu_custom_call.1} parent=5 // pred_fallthru
        _
    $region6: #{tpu_custom_call.1} parent=1 // loop_footer
      %s30 = sadd.s32 1, %s26
    $region7: #{tpu_custom_call.1} parent=1 // loop_footer_branch
      %25 = sbr.rel target = $region3
    $region8: #{tpu_custom_call.1} parent=1 // loop_exit
      _
    %2540 = vsyncpa [#allocation5], 1
    %s2541 = scalar_lea.sflag [#allocation5], 1
    %2542 = vsyncpa %s2541, 1

</llo_original>
